<compile_context>
chip_gen: v6e
topology: v6e:2x2x1
jax: 0.10.0
libtpu: 0.0.40
codegen_flags: <defaults>
</compile_context>

<pallas_src>
import jax
import jax.numpy as jnp
import numpy as np
from jax.experimental import pallas as pl
from jax.experimental.pallas import tpu as pltpu


def lstm_fused_kernel(x_ref, wih_ref, whh_ref, bias_ref,
                      out_ref, hN_ref, cN_ref,
                      gates_sc, h_sc, c_sc):
    """Grid = (batch_blocks, time_chunks); one chunk of Tc timesteps per call.

    x_ref   : (Tc, Bb, I)   compute dtype   raw input chunk
    wih_ref : (I, 4H)       compute dtype   resident, single-buffered
    whh_ref : (H, 4H)       compute dtype   resident, single-buffered
    bias_ref: (1, 4H)       f32             resident (b_ih + b_hh)
    out_ref : (Tc, Bb, H)   f32             hidden states for this chunk
    hN_ref  : (1, Bb, H)    f32             final h (written on last chunk)
    cN_ref  : (1, Bb, H)    f32             final c (written on last chunk)
    gates_sc: (Tc, Bb, 4H)  f32 VMEM        fused input projection for chunk
    h_sc/c_sc: (Bb, H)      f32 VMEM        state, persistent across chunks
    """
    t_chunk = pl.program_id(1)

    @pl.when(t_chunk == 0)
    def _():
        h_sc[...] = jnp.zeros_like(h_sc)
        c_sc[...] = jnp.zeros_like(c_sc)

    Tc, Bb, I = x_ref.shape
    H = h_sc.shape[-1]

    # Resident weights, loaded once per grid step (hoisted out of time loop).
    wih = wih_ref[...]                                   # (I, 4H)
    whh = whh_ref[...]                                   # (H, 4H)
    bias = bias_ref[...]                                 # (1, 4H) f32

    # ---- Fused input projection: one big MXU matmul per chunk. ----
    # The MXU is otherwise idle during the latency-bound recurrence, so this
    # hides for free and removes the f32 xproj HBM round-trip.
    x_flat = x_ref[...].reshape(Tc * Bb, I)              # contiguous (Bb % 8 == 0)
    xg = jnp.dot(x_flat, wih, preferred_element_type=jnp.float32)
    gates_sc[...] = xg.reshape(Tc, Bb, 4 * H) + bias     # bias broadcast

    # When H is not a multiple of 128, per-gate slices of `gates` are
    # lane-masked relayouts; applying the nonlinearities full-width first
    # halves the EUP issues on the serial path.
    full_width_gates = (H % 128) != 0

    def step(t, carry):
        h, c = carry                                     # (Bb, H) f32 carries
        # Single MXU matmul on the serial path; f32 accumulation.
        gates = gates_sc[t] + jnp.dot(h.astype(whh.dtype), whh,
                                      preferred_element_type=jnp.float32)
        # PyTorch gate order [i, f, g, o]; gate math stays f32 (v5e-safe).
        if full_width_gates:
            sig = jax.nn.sigmoid(gates)                  # (Bb, 4H) lane-dense
            tnh = jnp.tanh(gates)                        # (Bb, 4H) lane-dense
            i_g = sig[:, 0 * H:1 * H]
            f_g = sig[:, 1 * H:2 * H]
            g_g = tnh[:, 2 * H:3 * H]
            o_g = sig[:, 3 * H:4 * H]
        else:
            i_g = jax.nn.sigmoid(gates[:, 0 * H:1 * H])
            f_g = jax.nn.sigmoid(gates[:, 1 * H:2 * H])
            g_g = jnp.tanh(gates[:, 2 * H:3 * H])
            o_g = jax.nn.sigmoid(gates[:, 3 * H:4 * H])
        c_new = f_g * c + i_g * g_g
        h_new = o_g * jnp.tanh(c_new)
        out_ref[t] = h_new.astype(out_ref.dtype)
        return (h_new, c_new)

    # Partial unroll: keeps LLO scheduler visibility without blowing
    # instruction memory / vreg live ranges for long chunks.
    h_fin, c_fin = jax.lax.fori_loop(0, Tc, step, (h_sc[...], c_sc[...]),
                                     unroll=min(Tc, 8))

    h_sc[...] = h_fin
    c_sc[...] = c_fin

    # Finalize: write (h_T, c_T) only once, on the last time chunk.
    @pl.when(t_chunk == pl.num_programs(1) - 1)
    def _():
        hN_ref[0] = h_fin.astype(hN_ref.dtype)
        cN_ref[0] = c_fin.astype(cN_ref.dtype)


def _largest_divisor(n, cap):
    cap = max(1, min(n, cap))
    for d in range(cap, 0, -1):
        if n % d == 0:
            return d
    return 1


def _default_batch_block(B):
    """v7x has 2 TensorCores: split the batch across them when the split keeps
    Bb a multiple of 8 (sublane).  v5e/v6e: one block (single TC, extra blocks
    only multiply per-grid-step overhead)."""
    nblk = 1
    try:
        kind = jax.devices()[0].device_kind.lower()
        if "v7" in kind or "tpu7" in kind:
            nblk = 2
    except Exception:
        nblk = 1
    if nblk > 1 and B % nblk == 0 and (B // nblk) % 8 == 0:
        return B // nblk
    return B


def lstm_forward(x, w_ih, w_hh, b_ih, b_hh, *,
                 compute_dtype=jnp.bfloat16, time_chunk=None, batch_block=None,
                 vmem_limit_bytes=None):
    """x: (T, B, I); w_ih: (4H, I); w_hh: (4H, H); b_*: (4H,).

    Returns (context (T,B,H), (h_T (1,B,H), c_T (1,B,H))), all f32, matching
    torch.nn.LSTM(batch_first=False) with zero initial state.
    """
    T, B, I = x.shape
    fourH, H = w_hh.shape
    assert fourH == 4 * H and w_ih.shape == (4 * H, I)

    Bb = batch_block if batch_block is not None else _default_batch_block(B)
    assert B % Bb == 0

    itemsize = jnp.dtype(compute_dtype).itemsize
    if time_chunk is None:
        # Keep (double-buffered x chunk + double-buffered out chunk + gates
        # scratch) under ~24 MiB — safe on every generation, including v7x's
        # 64 MiB physical / 32 MiB scoped-default VMEM.
        budget = 24 * 1024 * 1024
        per_step = Bb * (2 * I * itemsize      # x chunk, double-buffered
                         + 2 * H * 4           # out chunk (f32), double-buffered
                         + 4 * H * 4)          # gates scratch (f32)
        cap = max(1, min(128, budget // max(per_step, 1)))
        Tc = _largest_divisor(T, cap)
    else:
        Tc = time_chunk
    assert T % Tc == 0

    # Operands for the kernel: bf16 (MXU-native) by default, f32 accumulation.
    x_c = jnp.asarray(x, compute_dtype)                       # (T, B, I)
    wih_t = jnp.asarray(w_ih.T, compute_dtype)                # (I, 4H) resident
    whh_t = jnp.asarray(w_hh.T, compute_dtype)                # (H, 4H) resident
    bias = jnp.asarray(b_ih + b_hh, jnp.float32).reshape(1, 4 * H)

    if vmem_limit_bytes is None:
        resident = (I * 4 * H + H * 4 * H) * itemsize + 4 * H * 4
        chunks = 2 * Tc * Bb * (I * itemsize + H * 4)
        scratch = Tc * Bb * 4 * H * 4 + 2 * Bb * H * 4 + 2 * Bb * H * 4
        needed = int((resident + chunks + scratch) * 1.5) + (4 << 20)
        vmem_limit_bytes = min(max(needed, 32 << 20), 64 << 20)

    out_shapes = (
        jax.ShapeDtypeStruct((T, B, H), jnp.float32),         # context
        jax.ShapeDtypeStruct((1, B, H), jnp.float32),         # h_T
        jax.ShapeDtypeStruct((1, B, H), jnp.float32),         # c_T
    )

    # NOTE: the time axis MUST stay innermost and "arbitrary" — the persistent
    # h_sc/c_sc scratch carries state across it.
    grid_spec = pltpu.PrefetchScalarGridSpec(
        num_scalar_prefetch=0,
        grid=(B // Bb, T // Tc),                              # (batch blocks, time chunks)
        in_specs=[
            pl.BlockSpec((Tc, Bb, I), lambda b, t: (t, b, 0)),            # x chunk
            pl.BlockSpec((I, 4 * H), lambda b, t: (0, 0),
                         pipeline_mode=pl.Buffered(1)),                   # W_ih^T (resident)
            pl.BlockSpec((H, 4 * H), lambda b, t: (0, 0),
                         pipeline_mode=pl.Buffered(1)),                   # W_hh^T (resident)
            pl.BlockSpec((1, 4 * H), lambda b, t: (0, 0),
                         pipeline_mode=pl.Buffered(1)),                   # bias (resident)
        ],
        out_specs=[
            pl.BlockSpec((Tc, Bb, H), lambda b, t: (t, b, 0)),            # context chunk
            pl.BlockSpec((1, Bb, H), lambda b, t: (0, b, 0)),             # h_T
            pl.BlockSpec((1, Bb, H), lambda b, t: (0, b, 0)),             # c_T
        ],
        scratch_shapes=[
            pltpu.VMEM((Tc, Bb, 4 * H), jnp.float32),   # fused input-proj gates
            pltpu.VMEM((Bb, H), jnp.float32),           # h state (persists across chunks)
            pltpu.VMEM((Bb, H), jnp.float32),           # c state
        ],
    )

    context, hN, cN = pl.pallas_call(
        lstm_fused_kernel,
        out_shape=out_shapes,
        grid_spec=grid_spec,
        compiler_params=pltpu.CompilerParams(
            # batch blocks independent (v7x megacore); time is sequential.
            dimension_semantics=("parallel", "arbitrary"),
            vmem_limit_bytes=int(vmem_limit_bytes)),
    )(x_c, wih_t, whh_t, bias)

    return context, (hN, cN)


def lstm_reference(x, w_ih, w_hh, b_ih, b_hh):
    """Pure-JAX f32 reference matching torch.nn.LSTM forward (1 layer, zero init)."""
    T, B, I = x.shape
    H = w_hh.shape[1]

    def step(carry, x_t):
        h, c = carry
        gates = x_t @ w_ih.T + b_ih + h @ w_hh.T + b_hh
        i_g = jax.nn.sigmoid(gates[:, 0 * H:1 * H])
        f_g = jax.nn.sigmoid(gates[:, 1 * H:2 * H])
        g_g = jnp.tanh(gates[:, 2 * H:3 * H])
        o_g = jax.nn.sigmoid(gates[:, 3 * H:4 * H])
        c_new = f_g * c + i_g * g_g
        h_new = o_g * jnp.tanh(c_new)
        return (h_new, c_new), h_new

    h0 = jnp.zeros((B, H), jnp.float32)
    c0 = jnp.zeros((B, H), jnp.float32)
    (hN, cN), outs = jax.lax.scan(step, (h0, c0), x)
    return outs, (hN[None], cN[None])


if __name__ == "__main__":
    # Small shapes: seq=8, batch=8, input_size=16, hidden_size=32
    T, B, I, H = 8, 8, 16, 32

    key = jax.random.PRNGKey(0)
    kx, k1, k2, k3, k4 = jax.random.split(key, 5)

    bound = 1.0 / np.sqrt(H)   # PyTorch init range U(-1/sqrt(H), 1/sqrt(H))
    x = jax.random.normal(kx, (T, B, I), jnp.float32)
    w_ih = jax.random.uniform(k1, (4 * H, I), jnp.float32, -bound, bound)
    w_hh = jax.random.uniform(k2, (4 * H, H), jnp.float32, -bound, bound)
    b_ih = jax.random.uniform(k3, (4 * H,), jnp.float32, -bound, bound)
    b_hh = jax.random.uniform(k4, (4 * H,), jnp.float32, -bound, bound)

    ref_ctx, (ref_h, ref_c) = lstm_reference(x, w_ih, w_hh, b_ih, b_hh)

    # 1) f32 path: strict correctness check of the kernel logic.
    ctx32, (h32, c32) = lstm_forward(x, w_ih, w_hh, b_ih, b_hh,
                                     compute_dtype=jnp.float32)
    jax.block_until_ready((ctx32, h32, c32))
    np.testing.assert_allclose(np.asarray(ctx32), np.asarray(ref_ctx), rtol=1e-5, atol=1e-5)
    np.testing.assert_allclose(np.asarray(h32), np.asarray(ref_h), rtol=1e-5, atol=1e-5)
    np.testing.assert_allclose(np.asarray(c32), np.asarray(ref_c), rtol=1e-5, atol=1e-5)

    # 2) Default bf16 fast path (MXU-native matmuls, f32 state/accumulation).
    context, (hidden, cell) = lstm_forward(x, w_ih, w_hh, b_ih, b_hh)
    jax.block_until_ready((context, hidden, cell))
    np.testing.assert_allclose(np.asarray(context), np.asarray(ref_ctx), rtol=5e-2, atol=5e-2)
    np.testing.assert_allclose(np.asarray(hidden), np.asarray(ref_h), rtol=5e-2, atol=5e-2)
    np.testing.assert_allclose(np.asarray(cell), np.asarray(ref_c), rtol=5e-2, atol=5e-2)

    assert context.shape == (T, B, H)
    assert hidden.shape == (1, B, H)
    assert cell.shape == (1, B, H)

    print("KERNEL_OK")
</pallas_src>

<mosaic_0001>
module attributes {stable_mosaic.version = 11 : i64} {
  func.func @lstm_fused_kernel(%arg0: i32, %arg1: i32, %arg2: memref<8x8x16xf32, #tpu.memory_space<vmem>>, %arg3: memref<16x128xf32, #tpu.memory_space<vmem>>, %arg4: memref<32x128xf32, #tpu.memory_space<vmem>>, %arg5: memref<1x128xf32, #tpu.memory_space<vmem>>, %arg6: memref<8x8x32xf32, #tpu.memory_space<vmem>>, %arg7: memref<1x8x32xf32, #tpu.memory_space<vmem>>, %arg8: memref<1x8x32xf32, #tpu.memory_space<vmem>>, %arg9: memref<8x8x128xf32, #tpu.memory_space<vmem>>, %arg10: memref<8x32xf32, #tpu.memory_space<vmem>>, %arg11: memref<8x32xf32, #tpu.memory_space<vmem>>) attributes {dimension_semantics = [#tpu.dimension_semantics<parallel>, #tpu.dimension_semantics<arbitrary>], iteration_bounds = array<i64: 1, 1>, scalar_prefetch = 0 : i64, scratch_operands = 3 : i64, tpu.core_type = #tpu.core_type<tc>, window_params = [{transform_indices = @transform_0, window_bounds = array<i64: 8, 8, 16>}, {pipeline_mode = #tpu.pipeline_mode<synchronous>, transform_indices = @transform_1, window_bounds = array<i64: 16, 128>}, {pipeline_mode = #tpu.pipeline_mode<synchronous>, transform_indices = @transform_2, window_bounds = array<i64: 32, 128>}, {pipeline_mode = #tpu.pipeline_mode<synchronous>, transform_indices = @transform_3, window_bounds = array<i64: 1, 128>}, {transform_indices = @transform_4, window_bounds = array<i64: 8, 8, 32>}, {transform_indices = @transform_5, window_bounds = array<i64: 1, 8, 32>}, {transform_indices = @transform_6, window_bounds = array<i64: 1, 8, 32>}]} {
    %c0_i32 = arith.constant 0 : i32
    %0 = arith.cmpi eq, %arg1, %c0_i32 : i32
    %1 = arith.extui %0 : i1 to i32
    %c0_i32_0 = arith.constant 0 : i32
    %2 = arith.cmpi ne, %1, %c0_i32_0 : i32
    scf.if %2 {
      %cst_71 = arith.constant 0.000000e+00 : f32
      %213 = vector.broadcast %cst_71 : f32 to vector<8x32xf32>
      %c0_72 = arith.constant 0 : index
      %c0_73 = arith.constant 0 : index
      %214 = vector.load %arg10[%c0_72, %c0_73] : memref<8x32xf32, #tpu.memory_space<vmem>>, vector<8x32xf32>
      tpu.vector_store %arg10[%c0_72, %c0_73], %213 {strides = array<i32>} : memref<8x32xf32, #tpu.memory_space<vmem>>, vector<8x32xf32>,
      %cst_74 = arith.constant 0.000000e+00 : f32
      %215 = vector.broadcast %cst_74 : f32 to vector<8x32xf32>
      %c0_75 = arith.constant 0 : index
      %c0_76 = arith.constant 0 : index
      %216 = vector.load %arg11[%c0_75, %c0_76] : memref<8x32xf32, #tpu.memory_space<vmem>>, vector<8x32xf32>
      tpu.vector_store %arg11[%c0_75, %c0_76], %215 {strides = array<i32>} : memref<8x32xf32, #tpu.memory_space<vmem>>, vector<8x32xf32>,
    } else {
    }
    %c0 = arith.constant 0 : index
    %c0_1 = arith.constant 0 : index
    %3 = vector.load %arg3[%c0, %c0_1] : memref<16x128xf32, #tpu.memory_space<vmem>>, vector<16x128xf32>
    %c0_2 = arith.constant 0 : index
    %c0_3 = arith.constant 0 : index
    %4 = vector.load %arg4[%c0_2, %c0_3] : memref<32x128xf32, #tpu.memory_space<vmem>>, vector<32x128xf32>
    %c0_4 = arith.constant 0 : index
    %c0_5 = arith.constant 0 : index
    %5 = vector.load %arg5[%c0_4, %c0_5] : memref<1x128xf32, #tpu.memory_space<vmem>>, vector<1x128xf32>
    %c0_6 = arith.constant 0 : index
    %c0_7 = arith.constant 0 : index
    %c0_8 = arith.constant 0 : index
    %6 = vector.load %arg2[%c0_6, %c0_7, %c0_8] : memref<8x8x16xf32, #tpu.memory_space<vmem>>, vector<8x8x16xf32>
    %7 = vector.shape_cast %6 : vector<8x8x16xf32> to vector<64x16xf32>
    %cst = arith.constant dense<0.000000e+00> : vector<64x128xf32>
    %8 = tpu.matmul %7, %3, %cst {dimension_numbers = #tpu.dot_dimension_numbers<[1], [0], [0], [1], [0, 0, 1, 1], [], []>} : vector<64x16xf32>, vector<16x128xf32>, vector<64x128xf32> -> vector<64x128xf32>
    %9 = vector.shape_cast %8 : vector<64x128xf32> to vector<8x8x128xf32>
    %10 = vector.shape_cast %5 : vector<1x128xf32> to vector<1x1x128xf32>
    %11 = vector.broadcast %10 : vector<1x1x128xf32> to vector<8x8x128xf32>
    %12 = arith.addf %9, %11 : vector<8x8x128xf32>
    %c0_9 = arith.constant 0 : index
    %c0_10 = arith.constant 0 : index
    %c0_11 = arith.constant 0 : index
    %13 = vector.load %arg9[%c0_9, %c0_10, %c0_11] : memref<8x8x128xf32, #tpu.memory_space<vmem>>, vector<8x8x128xf32>
    tpu.vector_store %arg9[%c0_9, %c0_10, %c0_11], %12 {strides = array<i32>} : memref<8x8x128xf32, #tpu.memory_space<vmem>>, vector<8x8x128xf32>,
    %c0_12 = arith.constant 0 : index
    %c0_13 = arith.constant 0 : index
    %14 = vector.load %arg10[%c0_12, %c0_13] : memref<8x32xf32, #tpu.memory_space<vmem>>, vector<8x32xf32>
    %c0_14 = arith.constant 0 : index
    %c0_15 = arith.constant 0 : index
    %15 = vector.load %arg11[%c0_14, %c0_15] : memref<8x32xf32, #tpu.memory_space<vmem>>, vector<8x32xf32>
    %c0_i32_16 = arith.constant 0 : i32
    %16 = arith.index_cast %c0_i32_16 : i32 to index
    %c0_17 = arith.constant 0 : index
    %c0_18 = arith.constant 0 : index
    %17 = vector.load %arg9[%16, %c0_17, %c0_18] : memref<8x8x128xf32, #tpu.memory_space<vmem>>, vector<1x8x128xf32>
    %18 = vector.shape_cast %17 : vector<1x8x128xf32> to vector<8x128xf32>
    %cst_19 = arith.constant dense<0.000000e+00> : vector<8x128xf32>
    %19 = tpu.matmul %14, %4, %cst_19 {dimension_numbers = #tpu.dot_dimension_numbers<[1], [0], [0], [1], [0, 0, 1, 1], [], []>} : vector<8x32xf32>, vector<32x128xf32>, vector<8x128xf32> -> vector<8x128xf32>
    %20 = arith.addf %18, %19 : vector<8x128xf32>
    %21 = arith.negf %20 : vector<8x128xf32>
    %22 = math.exp %21 : vector<8x128xf32>
    %cst_20 = arith.constant 1.000000e+00 : f32
    %23 = vector.broadcast %cst_20 : f32 to vector<8x128xf32>
    %24 = arith.addf %23, %22 : vector<8x128xf32>
    %25 = arith.divf %23, %24 : vector<8x128xf32>
    %26 = math.tanh %20 : vector<8x128xf32>
    %27 = vector.extract_strided_slice %25 {offsets = [0, 0], sizes = [8, 32], strides = [1, 1]} : vector<8x128xf32> to vector<8x32xf32>
    %28 = vector.extract_strided_slice %25 {offsets = [0, 32], sizes = [8, 32], strides = [1, 1]} : vector<8x128xf32> to vector<8x32xf32>
    %29 = vector.extract_strided_slice %26 {offsets = [0, 64], sizes = [8, 32], strides = [1, 1]} : vector<8x128xf32> to vector<8x32xf32>
    %30 = vector.extract_strided_slice %25 {offsets = [0, 96], sizes = [8, 32], strides = [1, 1]} : vector<8x128xf32> to vector<8x32xf32>
    %31 = arith.mulf %28, %15 : vector<8x32xf32>
    %32 = arith.mulf %27, %29 : vector<8x32xf32>
    %33 = arith.addf %31, %32 : vector<8x32xf32>
    %34 = math.tanh %33 : vector<8x32xf32>
    %35 = arith.mulf %30, %34 : vector<8x32xf32>
    %36 = arith.index_cast %c0_i32_16 : i32 to index
    %c0_21 = arith.constant 0 : index
    %c0_22 = arith.constant 0 : index
    %37 = vector.load %arg6[%36, %c0_21, %c0_22] : memref<8x8x32xf32, #tpu.memory_space<vmem>>, vector<1x8x32xf32>
    %38 = vector.shape_cast %37 : vector<1x8x32xf32> to vector<8x32xf32>
    %39 = vector.shape_cast %35 : vector<8x32xf32> to vector<1x8x32xf32>
    tpu.vector_store %arg6[%36, %c0_21, %c0_22], %39 {strides = array<i32>} : memref<8x8x32xf32, #tpu.memory_space<vmem>>, vector<1x8x32xf32>,
    %c1_i32 = arith.constant 1 : i32
    %40 = arith.index_cast %c1_i32 : i32 to index
    %c0_23 = arith.constant 0 : index
    %c0_24 = arith.constant 0 : index
    %41 = vector.load %arg9[%40, %c0_23, %c0_24] : memref<8x8x128xf32, #tpu.memory_space<vmem>>, vector<1x8x128xf32>
    %42 = vector.shape_cast %41 : vector<1x8x128xf32> to vector<8x128xf32>
    %cst_25 = arith.constant dense<0.000000e+00> : vector<8x128xf32>
    %43 = tpu.matmul %35, %4, %cst_25 {dimension_numbers = #tpu.dot_dimension_numbers<[1], [0], [0], [1], [0, 0, 1, 1], [], []>} : vector<8x32xf32>, vector<32x128xf32>, vector<8x128xf32> -> vector<8x128xf32>
    %44 = arith.addf %42, %43 : vector<8x128xf32>
    %45 = arith.negf %44 : vector<8x128xf32>
    %46 = math.exp %45 : vector<8x128xf32>
    %cst_26 = arith.constant 1.000000e+00 : f32
    %47 = vector.broadcast %cst_26 : f32 to vector<8x128xf32>
    %48 = arith.addf %47, %46 : vector<8x128xf32>
    %49 = arith.divf %47, %48 : vector<8x128xf32>
    %50 = math.tanh %44 : vector<8x128xf32>
    %51 = vector.extract_strided_slice %49 {offsets = [0, 0], sizes = [8, 32], strides = [1, 1]} : vector<8x128xf32> to vector<8x32xf32>
    %52 = vector.extract_strided_slice %49 {offsets = [0, 32], sizes = [8, 32], strides = [1, 1]} : vector<8x128xf32> to vector<8x32xf32>
    %53 = vector.extract_strided_slice %50 {offsets = [0, 64], sizes = [8, 32], strides = [1, 1]} : vector<8x128xf32> to vector<8x32xf32>
    %54 = vector.extract_strided_slice %49 {offsets = [0, 96], sizes = [8, 32], strides = [1, 1]} : vector<8x128xf32> to vector<8x32xf32>
    %55 = arith.mulf %52, %33 : vector<8x32xf32>
    %56 = arith.mulf %51, %53 : vector<8x32xf32>
    %57 = arith.addf %55, %56 : vector<8x32xf32>
    %58 = math.tanh %57 : vector<8x32xf32>
    %59 = arith.mulf %54, %58 : vector<8x32xf32>
    %60 = arith.index_cast %c1_i32 : i32 to index
    %c0_27 = arith.constant 0 : index
    %c0_28 = arith.constant 0 : index
    %61 = vector.load %arg6[%60, %c0_27, %c0_28] : memref<8x8x32xf32, #tpu.memory_space<vmem>>, vector<1x8x32xf32>
    %62 = vector.shape_cast %61 : vector<1x8x32xf32> to vector<8x32xf32>
    %63 = vector.shape_cast %59 : vector<8x32xf32> to vector<1x8x32xf32>
    tpu.vector_store %arg6[%60, %c0_27, %c0_28], %63 {strides = array<i32>} : memref<8x8x32xf32, #tpu.memory_space<vmem>>, vector<1x8x32xf32>,
    %c2_i32 = arith.constant 2 : i32
    %64 = arith.index_cast %c2_i32 : i32 to index
    %c0_29 = arith.constant 0 : index
    %c0_30 = arith.constant 0 : index
    %65 = vector.load %arg9[%64, %c0_29, %c0_30] : memref<8x8x128xf32, #tpu.memory_space<vmem>>, vector<1x8x128xf32>
    %66 = vector.shape_cast %65 : vector<1x8x128xf32> to vector<8x128xf32>
    %cst_31 = arith.constant dense<0.000000e+00> : vector<8x128xf32>
    %67 = tpu.matmul %59, %4, %cst_31 {dimension_numbers = #tpu.dot_dimension_numbers<[1], [0], [0], [1], [0, 0, 1, 1], [], []>} : vector<8x32xf32>, vector<32x128xf32>, vector<8x128xf32> -> vector<8x128xf32>
    %68 = arith.addf %66, %67 : vector<8x128xf32>
    %69 = arith.negf %68 : vector<8x128xf32>
    %70 = math.exp %69 : vector<8x128xf32>
    %cst_32 = arith.constant 1.000000e+00 : f32
    %71 = vector.broadcast %cst_32 : f32 to vector<8x128xf32>
    %72 = arith.addf %71, %70 : vector<8x128xf32>
    %73 = arith.divf %71, %72 : vector<8x128xf32>
    %74 = math.tanh %68 : vector<8x128xf32>
    %75 = vector.extract_strided_slice %73 {offsets = [0, 0], sizes = [8, 32], strides = [1, 1]} : vector<8x128xf32> to vector<8x32xf32>
    %76 = vector.extract_strided_slice %73 {offsets = [0, 32], sizes = [8, 32], strides = [1, 1]} : vector<8x128xf32> to vector<8x32xf32>
    %77 = vector.extract_strided_slice %74 {offsets = [0, 64], sizes = [8, 32], strides = [1, 1]} : vector<8x128xf32> to vector<8x32xf32>
    %78 = vector.extract_strided_slice %73 {offsets = [0, 96], sizes = [8, 32], strides = [1, 1]} : vector<8x128xf32> to vector<8x32xf32>
    %79 = arith.mulf %76, %57 : vector<8x32xf32>
    %80 = arith.mulf %75, %77 : vector<8x32xf32>
    %81 = arith.addf %79, %80 : vector<8x32xf32>
    %82 = math.tanh %81 : vector<8x32xf32>
    %83 = arith.mulf %78, %82 : vector<8x32xf32>
    %84 = arith.index_cast %c2_i32 : i32 to index
    %c0_33 = arith.constant 0 : index
    %c0_34 = arith.constant 0 : index
    %85 = vector.load %arg6[%84, %c0_33, %c0_34] : memref<8x8x32xf32, #tpu.memory_space<vmem>>, vector<1x8x32xf32>
    %86 = vector.shape_cast %85 : vector<1x8x32xf32> to vector<8x32xf32>
    %87 = vector.shape_cast %83 : vector<8x32xf32> to vector<1x8x32xf32>
    tpu.vector_store %arg6[%84, %c0_33, %c0_34], %87 {strides = array<i32>} : memref<8x8x32xf32, #tpu.memory_space<vmem>>, vector<1x8x32xf32>,
    %c3_i32 = arith.constant 3 : i32
    %88 = arith.index_cast %c3_i32 : i32 to index
    %c0_35 = arith.constant 0 : index
    %c0_36 = arith.constant 0 : index
    %89 = vector.load %arg9[%88, %c0_35, %c0_36] : memref<8x8x128xf32, #tpu.memory_space<vmem>>, vector<1x8x128xf32>
    %90 = vector.shape_cast %89 : vector<1x8x128xf32> to vector<8x128xf32>
    %cst_37 = arith.constant dense<0.000000e+00> : vector<8x128xf32>
    %91 = tpu.matmul %83, %4, %cst_37 {dimension_numbers = #tpu.dot_dimension_numbers<[1], [0], [0], [1], [0, 0, 1, 1], [], []>} : vector<8x32xf32>, vector<32x128xf32>, vector<8x128xf32> -> vector<8x128xf32>
    %92 = arith.addf %90, %91 : vector<8x128xf32>
    %93 = arith.negf %92 : vector<8x128xf32>
    %94 = math.exp %93 : vector<8x128xf32>
    %cst_38 = arith.constant 1.000000e+00 : f32
    %95 = vector.broadcast %cst_38 : f32 to vector<8x128xf32>
    %96 = arith.addf %95, %94 : vector<8x128xf32>
    %97 = arith.divf %95, %96 : vector<8x128xf32>
    %98 = math.tanh %92 : vector<8x128xf32>
    %99 = vector.extract_strided_slice %97 {offsets = [0, 0], sizes = [8, 32], strides = [1, 1]} : vector<8x128xf32> to vector<8x32xf32>
    %100 = vector.extract_strided_slice %97 {offsets = [0, 32], sizes = [8, 32], strides = [1, 1]} : vector<8x128xf32> to vector<8x32xf32>
    %101 = vector.extract_strided_slice %98 {offsets = [0, 64], sizes = [8, 32], strides = [1, 1]} : vector<8x128xf32> to vector<8x32xf32>
    %102 = vector.extract_strided_slice %97 {offsets = [0, 96], sizes = [8, 32], strides = [1, 1]} : vector<8x128xf32> to vector<8x32xf32>
    %103 = arith.mulf %100, %81 : vector<8x32xf32>
    %104 = arith.mulf %99, %101 : vector<8x32xf32>
    %105 = arith.addf %103, %104 : vector<8x32xf32>
    %106 = math.tanh %105 : vector<8x32xf32>
    %107 = arith.mulf %102, %106 : vector<8x32xf32>
    %108 = arith.index_cast %c3_i32 : i32 to index
    %c0_39 = arith.constant 0 : index
    %c0_40 = arith.constant 0 : index
    %109 = vector.load %arg6[%108, %c0_39, %c0_40] : memref<8x8x32xf32, #tpu.memory_space<vmem>>, vector<1x8x32xf32>
    %110 = vector.shape_cast %109 : vector<1x8x32xf32> to vector<8x32xf32>
    %111 = vector.shape_cast %107 : vector<8x32xf32> to vector<1x8x32xf32>
    tpu.vector_store %arg6[%108, %c0_39, %c0_40], %111 {strides = array<i32>} : memref<8x8x32xf32, #tpu.memory_space<vmem>>, vector<1x8x32xf32>,
    %c4_i32 = arith.constant 4 : i32
    %112 = arith.index_cast %c4_i32 : i32 to index
    %c0_41 = arith.constant 0 : index
    %c0_42 = arith.constant 0 : index
    %113 = vector.load %arg9[%112, %c0_41, %c0_42] : memref<8x8x128xf32, #tpu.memory_space<vmem>>, vector<1x8x128xf32>
    %114 = vector.shape_cast %113 : vector<1x8x128xf32> to vector<8x128xf32>
    %cst_43 = arith.constant dense<0.000000e+00> : vector<8x128xf32>
    %115 = tpu.matmul %107, %4, %cst_43 {dimension_numbers = #tpu.dot_dimension_numbers<[1], [0], [0], [1], [0, 0, 1, 1], [], []>} : vector<8x32xf32>, vector<32x128xf32>, vector<8x128xf32> -> vector<8x128xf32>
    %116 = arith.addf %114, %115 : vector<8x128xf32>
    %117 = arith.negf %116 : vector<8x128xf32>
    %118 = math.exp %117 : vector<8x128xf32>
    %cst_44 = arith.constant 1.000000e+00 : f32
    %119 = vector.broadcast %cst_44 : f32 to vector<8x128xf32>
    %120 = arith.addf %119, %118 : vector<8x128xf32>
    %121 = arith.divf %119, %120 : vector<8x128xf32>
    %122 = math.tanh %116 : vector<8x128xf32>
    %123 = vector.extract_strided_slice %121 {offsets = [0, 0], sizes = [8, 32], strides = [1, 1]} : vector<8x128xf32> to vector<8x32xf32>
    %124 = vector.extract_strided_slice %121 {offsets = [0, 32], sizes = [8, 32], strides = [1, 1]} : vector<8x128xf32> to vector<8x32xf32>
    %125 = vector.extract_strided_slice %122 {offsets = [0, 64], sizes = [8, 32], strides = [1, 1]} : vector<8x128xf32> to vector<8x32xf32>
    %126 = vector.extract_strided_slice %121 {offsets = [0, 96], sizes = [8, 32], strides = [1, 1]} : vector<8x128xf32> to vector<8x32xf32>
    %127 = arith.mulf %124, %105 : vector<8x32xf32>
    %128 = arith.mulf %123, %125 : vector<8x32xf32>
    %129 = arith.addf %127, %128 : vector<8x32xf32>
    %130 = math.tanh %129 : vector<8x32xf32>
    %131 = arith.mulf %126, %130 : vector<8x32xf32>
    %132 = arith.index_cast %c4_i32 : i32 to index
    %c0_45 = arith.constant 0 : index
    %c0_46 = arith.constant 0 : index
    %133 = vector.load %arg6[%132, %c0_45, %c0_46] : memref<8x8x32xf32, #tpu.memory_space<vmem>>, vector<1x8x32xf32>
    %134 = vector.shape_cast %133 : vector<1x8x32xf32> to vector<8x32xf32>
    %135 = vector.shape_cast %131 : vector<8x32xf32> to vector<1x8x32xf32>
    tpu.vector_store %arg6[%132, %c0_45, %c0_46], %135 {strides = array<i32>} : memref<8x8x32xf32, #tpu.memory_space<vmem>>, vector<1x8x32xf32>,
    %c5_i32 = arith.constant 5 : i32
    %136 = arith.index_cast %c5_i32 : i32 to index
    %c0_47 = arith.constant 0 : index
    %c0_48 = arith.constant 0 : index
    %137 = vector.load %arg9[%136, %c0_47, %c0_48] : memref<8x8x128xf32, #tpu.memory_space<vmem>>, vector<1x8x128xf32>
    %138 = vector.shape_cast %137 : vector<1x8x128xf32> to vector<8x128xf32>
    %cst_49 = arith.constant dense<0.000000e+00> : vector<8x128xf32>
    %139 = tpu.matmul %131, %4, %cst_49 {dimension_numbers = #tpu.dot_dimension_numbers<[1], [0], [0], [1], [0, 0, 1, 1], [], []>} : vector<8x32xf32>, vector<32x128xf32>, vector<8x128xf32> -> vector<8x128xf32>
    %140 = arith.addf %138, %139 : vector<8x128xf32>
    %141 = arith.negf %140 : vector<8x128xf32>
    %142 = math.exp %141 : vector<8x128xf32>
    %cst_50 = arith.constant 1.000000e+00 : f32
    %143 = vector.broadcast %cst_50 : f32 to vector<8x128xf32>
    %144 = arith.addf %143, %142 : vector<8x128xf32>
    %145 = arith.divf %143, %144 : vector<8x128xf32>
    %146 = math.tanh %140 : vector<8x128xf32>
    %147 = vector.extract_strided_slice %145 {offsets = [0, 0], sizes = [8, 32], strides = [1, 1]} : vector<8x128xf32> to vector<8x32xf32>
    %148 = vector.extract_strided_slice %145 {offsets = [0, 32], sizes = [8, 32], strides = [1, 1]} : vector<8x128xf32> to vector<8x32xf32>
    %149 = vector.extract_strided_slice %146 {offsets = [0, 64], sizes = [8, 32], strides = [1, 1]} : vector<8x128xf32> to vector<8x32xf32>
    %150 = vector.extract_strided_slice %145 {offsets = [0, 96], sizes = [8, 32], strides = [1, 1]} : vector<8x128xf32> to vector<8x32xf32>
    %151 = arith.mulf %148, %129 : vector<8x32xf32>
    %152 = arith.mulf %147, %149 : vector<8x32xf32>
    %153 = arith.addf %151, %152 : vector<8x32xf32>
    %154 = math.tanh %153 : vector<8x32xf32>
    %155 = arith.mulf %150, %154 : vector<8x32xf32>
    %156 = arith.index_cast %c5_i32 : i32 to index
    %c0_51 = arith.constant 0 : index
    %c0_52 = arith.constant 0 : index
    %157 = vector.load %arg6[%156, %c0_51, %c0_52] : memref<8x8x32xf32, #tpu.memory_space<vmem>>, vector<1x8x32xf32>
    %158 = vector.shape_cast %157 : vector<1x8x32xf32> to vector<8x32xf32>
    %159 = vector.shape_cast %155 : vector<8x32xf32> to vector<1x8x32xf32>
    tpu.vector_store %arg6[%156, %c0_51, %c0_52], %159 {strides = array<i32>} : memref<8x8x32xf32, #tpu.memory_space<vmem>>, vector<1x8x32xf32>,
    %c6_i32 = arith.constant 6 : i32
    %160 = arith.index_cast %c6_i32 : i32 to index
    %c0_53 = arith.constant 0 : index
    %c0_54 = arith.constant 0 : index
    %161 = vector.load %arg9[%160, %c0_53, %c0_54] : memref<8x8x128xf32, #tpu.memory_space<vmem>>, vector<1x8x128xf32>
    %162 = vector.shape_cast %161 : vector<1x8x128xf32> to vector<8x128xf32>
    %cst_55 = arith.constant dense<0.000000e+00> : vector<8x128xf32>
    %163 = tpu.matmul %155, %4, %cst_55 {dimension_numbers = #tpu.dot_dimension_numbers<[1], [0], [0], [1], [0, 0, 1, 1], [], []>} : vector<8x32xf32>, vector<32x128xf32>, vector<8x128xf32> -> vector<8x128xf32>
    %164 = arith.addf %162, %163 : vector<8x128xf32>
    %165 = arith.negf %164 : vector<8x128xf32>
    %166 = math.exp %165 : vector<8x128xf32>
    %cst_56 = arith.constant 1.000000e+00 : f32
    %167 = vector.broadcast %cst_56 : f32 to vector<8x128xf32>
    %168 = arith.addf %167, %166 : vector<8x128xf32>
    %169 = arith.divf %167, %168 : vector<8x128xf32>
    %170 = math.tanh %164 : vector<8x128xf32>
    %171 = vector.extract_strided_slice %169 {offsets = [0, 0], sizes = [8, 32], strides = [1, 1]} : vector<8x128xf32> to vector<8x32xf32>
    %172 = vector.extract_strided_slice %169 {offsets = [0, 32], sizes = [8, 32], strides = [1, 1]} : vector<8x128xf32> to vector<8x32xf32>
    %173 = vector.extract_strided_slice %170 {offsets = [0, 64], sizes = [8, 32], strides = [1, 1]} : vector<8x128xf32> to vector<8x32xf32>
    %174 = vector.extract_strided_slice %169 {offsets = [0, 96], sizes = [8, 32], strides = [1, 1]} : vector<8x128xf32> to vector<8x32xf32>
    %175 = arith.mulf %172, %153 : vector<8x32xf32>
    %176 = arith.mulf %171, %173 : vector<8x32xf32>
    %177 = arith.addf %175, %176 : vector<8x32xf32>
    %178 = math.tanh %177 : vector<8x32xf32>
    %179 = arith.mulf %174, %178 : vector<8x32xf32>
    %180 = arith.index_cast %c6_i32 : i32 to index
    %c0_57 = arith.constant 0 : index
    %c0_58 = arith.constant 0 : index
    %181 = vector.load %arg6[%180, %c0_57, %c0_58] : memref<8x8x32xf32, #tpu.memory_space<vmem>>, vector<1x8x32xf32>
    %182 = vector.shape_cast %181 : vector<1x8x32xf32> to vector<8x32xf32>
    %183 = vector.shape_cast %179 : vector<8x32xf32> to vector<1x8x32xf32>
    tpu.vector_store %arg6[%180, %c0_57, %c0_58], %183 {strides = array<i32>} : memref<8x8x32xf32, #tpu.memory_space<vmem>>, vector<1x8x32xf32>,
    %c7_i32 = arith.constant 7 : i32
    %184 = arith.index_cast %c7_i32 : i32 to index
    %c0_59 = arith.constant 0 : index
    %c0_60 = arith.constant 0 : index
    %185 = vector.load %arg9[%184, %c0_59, %c0_60] : memref<8x8x128xf32, #tpu.memory_space<vmem>>, vector<1x8x128xf32>
    %186 = vector.shape_cast %185 : vector<1x8x128xf32> to vector<8x128xf32>
    %cst_61 = arith.constant dense<0.000000e+00> : vector<8x128xf32>
    %187 = tpu.matmul %179, %4, %cst_61 {dimension_numbers = #tpu.dot_dimension_numbers<[1], [0], [0], [1], [0, 0, 1, 1], [], []>} : vector<8x32xf32>, vector<32x128xf32>, vector<8x128xf32> -> vector<8x128xf32>
    %188 = arith.addf %186, %187 : vector<8x128xf32>
    %189 = arith.negf %188 : vector<8x128xf32>
    %190 = math.exp %189 : vector<8x128xf32>
    %cst_62 = arith.constant 1.000000e+00 : f32
    %191 = vector.broadcast %cst_62 : f32 to vector<8x128xf32>
    %192 = arith.addf %191, %190 : vector<8x128xf32>
    %193 = arith.divf %191, %192 : vector<8x128xf32>
    %194 = math.tanh %188 : vector<8x128xf32>
    %195 = vector.extract_strided_slice %193 {offsets = [0, 0], sizes = [8, 32], strides = [1, 1]} : vector<8x128xf32> to vector<8x32xf32>
    %196 = vector.extract_strided_slice %193 {offsets = [0, 32], sizes = [8, 32], strides = [1, 1]} : vector<8x128xf32> to vector<8x32xf32>
    %197 = vector.extract_strided_slice %194 {offsets = [0, 64], sizes = [8, 32], strides = [1, 1]} : vector<8x128xf32> to vector<8x32xf32>
    %198 = vector.extract_strided_slice %193 {offsets = [0, 96], sizes = [8, 32], strides = [1, 1]} : vector<8x128xf32> to vector<8x32xf32>
    %199 = arith.mulf %196, %177 : vector<8x32xf32>
    %200 = arith.mulf %195, %197 : vector<8x32xf32>
    %201 = arith.addf %199, %200 : vector<8x32xf32>
    %202 = math.tanh %201 : vector<8x32xf32>
    %203 = arith.mulf %198, %202 : vector<8x32xf32>
    %204 = arith.index_cast %c7_i32 : i32 to index
    %c0_63 = arith.constant 0 : index
    %c0_64 = arith.constant 0 : index
    %205 = vector.load %arg6[%204, %c0_63, %c0_64] : memref<8x8x32xf32, #tpu.memory_space<vmem>>, vector<1x8x32xf32>
    %206 = vector.shape_cast %205 : vector<1x8x32xf32> to vector<8x32xf32>
    %207 = vector.shape_cast %203 : vector<8x32xf32> to vector<1x8x32xf32>
    tpu.vector_store %arg6[%204, %c0_63, %c0_64], %207 {strides = array<i32>} : memref<8x8x32xf32, #tpu.memory_space<vmem>>, vector<1x8x32xf32>,
    %c8_i32 = arith.constant 8 : i32
    %c0_65 = arith.constant 0 : index
    %c0_66 = arith.constant 0 : index
    %208 = vector.load %arg10[%c0_65, %c0_66] : memref<8x32xf32, #tpu.memory_space<vmem>>, vector<8x32xf32>
    tpu.vector_store %arg10[%c0_65, %c0_66], %203 {strides = array<i32>} : memref<8x32xf32, #tpu.memory_space<vmem>>, vector<8x32xf32>,
    %c0_67 = arith.constant 0 : index
    %c0_68 = arith.constant 0 : index
    %209 = vector.load %arg11[%c0_67, %c0_68] : memref<8x32xf32, #tpu.memory_space<vmem>>, vector<8x32xf32>
    tpu.vector_store %arg11[%c0_67, %c0_68], %201 {strides = array<i32>} : memref<8x32xf32, #tpu.memory_space<vmem>>, vector<8x32xf32>,
    %c0_i32_69 = arith.constant 0 : i32
    %210 = arith.cmpi eq, %arg1, %c0_i32_69 : i32
    %211 = arith.extui %210 : i1 to i32
    %c0_i32_70 = arith.constant 0 : i32
    %212 = arith.cmpi ne, %211, %c0_i32_70 : i32
    scf.if %212 {
      %c0_71 = arith.constant 0 : index
      %c0_72 = arith.constant 0 : index
      %c0_73 = arith.constant 0 : index
      %213 = vector.load %arg7[%c0_71, %c0_72, %c0_73] : memref<1x8x32xf32, #tpu.memory_space<vmem>>, vector<1x8x32xf32>
      %214 = vector.shape_cast %213 : vector<1x8x32xf32> to vector<8x32xf32>
      %215 = vector.shape_cast %203 : vector<8x32xf32> to vector<1x8x32xf32>
      tpu.vector_store %arg7[%c0_71, %c0_72, %c0_73], %215 {strides = array<i32>} : memref<1x8x32xf32, #tpu.memory_space<vmem>>, vector<1x8x32xf32>,
      %c0_74 = arith.constant 0 : index
      %c0_75 = arith.constant 0 : index
      %c0_76 = arith.constant 0 : index
      %216 = vector.load %arg8[%c0_74, %c0_75, %c0_76] : memref<1x8x32xf32, #tpu.memory_space<vmem>>, vector<1x8x32xf32>
      %217 = vector.shape_cast %216 : vector<1x8x32xf32> to vector<8x32xf32>
      %218 = vector.shape_cast %201 : vector<8x32xf32> to vector<1x8x32xf32>
      tpu.vector_store %arg8[%c0_74, %c0_75, %c0_76], %218 {strides = array<i32>} : memref<1x8x32xf32, #tpu.memory_space<vmem>>, vector<1x8x32xf32>,
    } else {
    }
    return
  }
  func.func @transform_0(%arg0: i32, %arg1: i32) -> (i32, i32, i32) {
    %c0_i32 = arith.constant 0 : i32
    %c0_i32_0 = arith.constant 0 : i32
    return %arg1, %arg0, %c0_i32 : i32, i32, i32
  }
  func.func @transform_1(%arg0: i32, %arg1: i32) -> (i32, i32) {
    %c0_i32 = arith.constant 0 : i32
    %c0_i32_0 = arith.constant 0 : i32
    %c0_i32_1 = arith.constant 0 : i32
    return %c0_i32, %c0_i32_0 : i32, i32
  }
  func.func @transform_2(%arg0: i32, %arg1: i32) -> (i32, i32) {
    %c0_i32 = arith.constant 0 : i32
    %c0_i32_0 = arith.constant 0 : i32
    %c0_i32_1 = arith.constant 0 : i32
    return %c0_i32, %c0_i32_0 : i32, i32
  }
  func.func @transform_3(%arg0: i32, %arg1: i32) -> (i32, i32) {
    %c0_i32 = arith.constant 0 : i32
    %c0_i32_0 = arith.constant 0 : i32
    %c0_i32_1 = arith.constant 0 : i32
    return %c0_i32, %c0_i32_0 : i32, i32
  }
  func.func @transform_4(%arg0: i32, %arg1: i32) -> (i32, i32, i32) {
    %c0_i32 = arith.constant 0 : i32
    %c0_i32_0 = arith.constant 0 : i32
    return %arg1, %arg0, %c0_i32 : i32, i32, i32
  }
  func.func @transform_5(%arg0: i32, %arg1: i32) -> (i32, i32, i32) {
    %c0_i32 = arith.constant 0 : i32
    %c0_i32_0 = arith.constant 0 : i32
    %c0_i32_1 = arith.constant 0 : i32
    return %c0_i32, %arg0, %c0_i32_0 : i32, i32, i32
  }
  func.func @transform_6(%arg0: i32, %arg1: i32) -> (i32, i32, i32) {
    %c0_i32 = arith.constant 0 : i32
    %c0_i32_0 = arith.constant 0 : i32
    %c0_i32_1 = arith.constant 0 : i32
    return %c0_i32, %arg0, %c0_i32_0 : i32, i32, i32
  }
}

</mosaic_0001>

<llo_original>
// kernel: tpu_custom_call.1
$region0: #{tpu_custom_call.1}
  #allocation0 [shape = 'u32[]', space=smem, size = 0x4, offset = 0x4, fixed_abs, tag = 'smem constant byte address 0x4 - core index']
  #allocation1 [shape = 'u32[144,128]{1,0:T(1,128)}', space=vmem, size = 0x12000, scoped, tag = 'internal scratch']
  #allocation2 [shape = 'f32[8,8,128]{2,1,0:T(8,128)}', space=vmem, size = 0x8000, scoped, tag = 'scratch operand']
  #allocation3 [shape = 'f32[8,32]{1,0:T(8,128)}', space=vmem, size = 0x1000, scoped, tag = 'scratch operand']
  #allocation4 [shape = 'f32[8,32]{1,0:T(8,128)}', space=vmem, size = 0x1000, scoped, tag = 'scratch operand']
  %s0 = inlined_call_operand.hbm [shape: f32[8,8,16], index: 0, kind: input, shape index: {}]
  %s1 = inlined_call_operand.hbm [shape: f32[16,128], index: 1, kind: input, shape index: {}]
  %s2 = inlined_call_operand.hbm [shape: f32[32,128], index: 2, kind: input, shape index: {}]
  %s3 = inlined_call_operand.vmem [shape: f32[1,128], index: 3, kind: input, shape index: {}]
  %s4 = inlined_call_operand.hbm [shape: f32[8,8,32], index: 4, kind: output, shape index: {0}]
  %s5 = inlined_call_operand.hbm [shape: f32[1,8,32], index: 5, kind: output, shape index: {1}]
  %s6 = inlined_call_operand.hbm [shape: f32[1,8,32], index: 6, kind: output, shape index: {2}]
  %7 = xla_tuple %s4, %s5, %s6
  %s8 = sld [smem:[#allocation0]]
  $region62: #{tpu_custom_call.1} parent=0
    _
  %s10 = ssub.s32 1, %s8
  %s11 = scalar_select 0, %s10, %s8
  $region1: #{tpu_custom_call.1} parent=0
    #allocation5 [shape = 'u8[32768]{0}', space=vmem, size = 0x8000, scoped, tag = 'input window, operand 0, single buffered']
    #allocation6 [shape = 's32[1]{0}', space=sflag, size = 0x4, scoped, tag = 'scoped memory for tpu_custom_call.1']
    #allocation7 [shape = 's32[1]{0}', space=sflag, size = 0x4, scoped, tag = 'scoped memory for tpu_custom_call.1']
    #allocation8 [shape = 'u8[8192]{0}', space=vmem, size = 0x2000, scoped, tag = 'input window, operand 1, single buffered']
    #allocation9 [shape = 's32[1]{0}', space=sflag, size = 0x4, scoped, tag = 'scoped memory for tpu_custom_call.1']
    #allocation10 [shape = 'u8[16384]{0}', space=vmem, size = 0x4000, scoped, tag = 'input window, operand 2, single buffered']
    #allocation11 [shape = 'u8[32768]{0}', space=vmem, size = 0x8000, scoped, tag = 'output window, operand 0, single buffered']
    #allocation12 [shape = 'u8[4096]{0}', space=vmem, size = 0x1000, scoped, tag = 'output window, operand 1, single buffered']
    #allocation13 [shape = 's32[1]{0}', space=sflag, size = 0x4, scoped, tag = 'scoped memory for tpu_custom_call.1']
    #allocation14 [shape = 'u8[4096]{0}', space=vmem, size = 0x1000, scoped, tag = 'output window, operand 2, single buffered']
    %12 = vsyncpa [#allocation6], 0
    %13 = vsyncpa [#allocation9], 0
    %14 = vsyncpa [#allocation7], 0
    %15 = vsyncpa [#allocation13], 0
    // Predicated region
    $region2: #{tpu_custom_call.1} parent=1 // pred_check
      _
    $region3: #{tpu_custom_call.1} parent=1 // pred_check_branch
      %17 = sbr.rel (0) target = $region5
    $region4: #{tpu_custom_call.1} parent=1 // pred_region
      %s19 = ssub.s32 1024, 1024
      %20 = vsyncadd [#allocation6], %s19
      %s21 = sshll.u32 [#allocation5], 4
      %s22 = int_to_ptr.vmem [resolvable:$true] %s21
      %27 = dma.hbm_to_vmem [thread:$0]  %s0, 1024, %s22, [#allocation6], 128, 128, 8
    $region5: #{tpu_custom_call.1} parent=1 // pred_fallthru
      _
    // Predicated region
    $region6: #{tpu_custom_call.1} parent=1 // pred_check
      _
    $region7: #{tpu_custom_call.1} parent=1 // pred_check_branch
      %29 = sbr.rel (0) target = $region9
    $region8: #{tpu_custom_call.1} parent=1 // pred_region
      %s31 = ssub.s32 256, 256
      %32 = vsyncadd [#allocation9], %s31
      %s33 = sshll.u32 [#allocation8], 4
      %s34 = int_to_ptr.vmem [resolvable:$true] %s33
      %39 = dma.hbm_to_vmem [thread:$0]  %s1, 256, %s34, [#allocation9], 128, 128, 8
    $region9: #{tpu_custom_call.1} parent=1 // pred_fallthru
      _
    // Predicated region
    $region10: #{tpu_custom_call.1} parent=1 // pred_check
      _
    $region11: #{tpu_custom_call.1} parent=1 // pred_check_branch
      %41 = sbr.rel (0) target = $region13
    $region12: #{tpu_custom_call.1} parent=1 // pred_region
      %s43 = ssub.s32 512, 512
      %44 = vsyncadd [#allocation9], %s43
      %s45 = sshll.u32 [#allocation10], 4
      %s46 = int_to_ptr.vmem [resolvable:$true] %s45
      %51 = dma.hbm_to_vmem [thread:$0]  %s2, 512, %s46, [#allocation9], 128, 128, 8
    $region13: #{tpu_custom_call.1} parent=1 // pred_fallthru
      _
    // Predicated region
    $region14: #{tpu_custom_call.1} parent=1 // pred_check
      _
    $region15: #{tpu_custom_call.1} parent=1 // pred_check_branch
      %53 = sbr.rel (0) target = $region17
    $region16: #{tpu_custom_call.1} parent=1 // pred_region
      _
    $region17: #{tpu_custom_call.1} parent=1 // pred_fallthru
      _
    // Predicated region
    $region18: #{tpu_custom_call.1} parent=1 // pred_check
      _
    $region19: #{tpu_custom_call.1} parent=1 // pred_check_branch
      %55 = sbr.rel (0) target = $region21
    $region20: #{tpu_custom_call.1} parent=1 // pred_region
      %56 = dma.done [#allocation6], 1024
    $region21: #{tpu_custom_call.1} parent=1 // pred_fallthru
      _
    // Predicated region
    $region22: #{tpu_custom_call.1} parent=1 // pred_check
      _
    $region23: #{tpu_custom_call.1} parent=1 // pred_check_branch
      %58 = sbr.rel (0) target = $region25
    $region24: #{tpu_custom_call.1} parent=1 // pred_region
      %59 = dma.done [#allocation9], 256
    $region25: #{tpu_custom_call.1} parent=1 // pred_fallthru
      _
    // Predicated region
    $region26: #{tpu_custom_call.1} parent=1 // pred_check
      _
    $region27: #{tpu_custom_call.1} parent=1 // pred_check_branch
      %61 = sbr.rel (0) target = $region29
    $region28: #{tpu_custom_call.1} parent=1 // pred_region
      %62 = dma.done [#allocation9], 512
    $region29: #{tpu_custom_call.1} parent=1 // pred_fallthru
      _
    %p63 = scmp.eq.s32.totalorder 0, 0
    // Predicated region
    $region30: #{tpu_custom_call.1} parent=1 // pred_check
      %p64 = pneg %p63
    $region31: #{tpu_custom_call.1} parent=1 // pred_check_branch
      %66 = sbr.rel (%p64) target = $region33
    $region32: #{tpu_custom_call.1} parent=1 // pred_region
      %vm67 = vcmask 261120
      %68 = vst.msk [vmem:[#allocation3] sm:$0xff] %vm67, 0.0
      %69 = vst.msk [vmem:[#allocation4] sm:$0xff] %vm67, 0.0
    $region33: #{tpu_custom_call.1} parent=1 // pred_fallthru
      _
    %v70 = vld [vmem:[#allocation8] sm:$0xff]
    %v71 = vld [vmem:[#allocation8 + $0x8] sm:$0xff]
    %v72 = vld [vmem:[#allocation10] sm:$0xff]
    %v73 = vld [vmem:[#allocation10 + $0x8] sm:$0xff]
    %v74 = vld [vmem:[#allocation10 + $0x10] sm:$0xff]
    %v75 = vld [vmem:[#allocation10 + $0x18] sm:$0xff]
    %v76 = vld [vmem:[%s3] sm:$0x1]
    %v77 = vld [vmem:[#allocation5] sm:$0xff]
    %v78 = vld [vmem:[#allocation5 + $0x8] sm:$0xff]
    %v79 = vld [vmem:[#allocation5 + $0x10] sm:$0xff]
    %v80 = vld [vmem:[#allocation5 + $0x18] sm:$0xff]
    %v81 = vld [vmem:[#allocation5 + $0x20] sm:$0xff]
    %v82 = vld [vmem:[#allocation5 + $0x28] sm:$0xff]
    %v83 = vld [vmem:[#allocation5 + $0x30] sm:$0xff]
    %v84 = vld [vmem:[#allocation5 + $0x38] sm:$0xff]
    %vm85 = vcmask 130048
    %v87 = vsel %vm85, %v77, 0
    %v90 = vsel %vm85, %v78, 0
    %v93 = vsel %vm85, %v79, 0
    %v96 = vsel %vm85, %v80, 0
    %v99 = vsel %vm85, %v81, 0
    %v102 = vsel %vm85, %v82, 0
    %v105 = vsel %vm85, %v83, 0
    %v108 = vsel %vm85, %v84, 0
    %110 = vmatprep.subr.mxu0 0.0
    %111 = vmatpush1.msra.mxu0 0.0
    %112 = vmatprep.subr.mxu0 0.0
    %113 = vmatpush1.msra.mxu0 0.0
    %114 = vmatprep.subr.mxu0 0.0
    %115 = vmatpush1.msra.mxu0 0.0
    %116 = vmatprep.subr.mxu0 0.0
    %117 = vmatpush1.msra.mxu0 0.0
    %118 = vmatprep.subr.mxu0 0.0
    %119 = vmatpush1.msra.mxu0 0.0
    %120 = vmatprep.subr.mxu0 0.0
    %121 = vmatpush1.msra.mxu0 0.0
    %122 = vmatprep.subr.mxu0 0.0
    %123 = vmatpush1.msra.mxu0 0.0
    %124 = vmatprep.subr.mxu0 0.0
    %125 = vmatpush1.msra.mxu0 0.0
    %126 = vmatprep.subr.mxu0 0.0
    %127 = vmatpush1.msra.mxu0 0.0
    %128 = vmatprep.subr.mxu0 0.0
    %129 = vmatpush1.msra.mxu0 0.0
    %130 = vmatprep.subr.mxu0 0.0
    %131 = vmatpush1.msra.mxu0 0.0
    %132 = vmatprep.subr.mxu0 0.0
    %133 = vmatpush1.msra.mxu0 0.0
    %134 = vmatprep.subr.mxu0 0.0
    %135 = vmatpush1.msra.mxu0 0.0
    %136 = vmatprep.subr.mxu0 0.0
    %137 = vmatpush1.msra.mxu0 0.0
    %138 = vmatprep.subr.mxu0 0.0
    %139 = vmatpush1.msra.mxu0 %v71
    %140 = vmatprep.subr.mxu0 0.0
    %141 = vmatpush1.msra.mxu0 %v70
    %142 = vmatprep.subr.mxu0 0.0
    %143 = vmatpush2.msra.mxu0 0.0
    %144 = vmatprep.subr.mxu0 0.0
    %145 = vmatpush2.msra.mxu0 0.0
    %146 = vmatprep.subr.mxu0 0.0
    %147 = vmatpush2.msra.mxu0 0.0
    %148 = vmatprep.subr.mxu0 0.0
    %149 = vmatpush2.msra.mxu0 0.0
    %150 = vmatprep.subr.mxu0 0.0
    %151 = vmatpush2.msra.mxu0 0.0
    %152 = vmatprep.subr.mxu0 0.0
    %153 = vmatpush2.msra.mxu0 0.0
    %154 = vmatprep.subr.mxu0 0.0
    %155 = vmatpush2.msra.mxu0 0.0
    %156 = vmatprep.subr.mxu0 0.0
    %157 = vmatpush2.msra.mxu0 0.0
    %158 = vmatprep.subr.mxu0 0.0
    %159 = vmatpush2.msra.mxu0 0.0
    %160 = vmatprep.subr.mxu0 0.0
    %161 = vmatpush2.msra.mxu0 0.0
    %162 = vmatprep.subr.mxu0 0.0
    %163 = vmatpush2.msra.mxu0 0.0
    %164 = vmatprep.subr.mxu0 0.0
    %165 = vmatpush2.msra.mxu0 0.0
    %166 = vmatprep.subr.mxu0 0.0
    %167 = vmatpush2.msra.mxu0 0.0
    %168 = vmatprep.subr.mxu0 0.0
    %169 = vmatpush2.msra.mxu0 0.0
    %170 = vmatprep.subr.mxu0 0.0
    %171 = vmatpush2.msra.mxu0 0.0
    %172 = vmatprep.subr.mxu0 0.0
    %173 = vmatpush2.msra.mxu0 0.0
    %174 = vmatprep.mubr.f32.mxu0 0.0
    %175 = vmatmul.mubr.f32.gmra.mxu0 %v87
    %v176 = vpop.f32.mrf.mxu0
    %v177 = vadd.f32 0.0, %v176
    %v178 = vpop.f32.mrf.mxu0
    %179 = vmatprep.mubr.f32.mxu0 0.0
    %180 = vmatmul.mubr.f32.gmra.mxu0 %v90
    %v181 = vpop.f32.mrf.mxu0
    %v182 = vadd.f32 0.0, %v181
    %v183 = vpop.f32.mrf.mxu0
    %184 = vmatprep.mubr.f32.mxu0 0.0
    %185 = vmatmul.mubr.f32.gmra.mxu0 %v93
    %v186 = vpop.f32.mrf.mxu0
    %v187 = vadd.f32 0.0, %v186
    %v188 = vpop.f32.mrf.mxu0
    %189 = vmatprep.mubr.f32.mxu0 0.0
    %190 = vmatmul.mubr.f32.gmra.mxu0 %v96
    %v191 = vpop.f32.mrf.mxu0
    %v192 = vadd.f32 0.0, %v191
    %v193 = vpop.f32.mrf.mxu0
    %194 = vmatprep.mubr.f32.mxu0 0.0
    %195 = vmatmul.mubr.f32.gmra.mxu0 %v99
    %v196 = vpop.f32.mrf.mxu0
    %v197 = vadd.f32 0.0, %v196
    %v198 = vpop.f32.mrf.mxu0
    %199 = vmatprep.mubr.f32.mxu0 0.0
    %200 = vmatmul.mubr.f32.gmra.mxu0 %v102
    %v201 = vpop.f32.mrf.mxu0
    %v202 = vadd.f32 0.0, %v201
    %v203 = vpop.f32.mrf.mxu0
    %204 = vmatprep.mubr.f32.mxu0 0.0
    %205 = vmatmul.mubr.f32.gmra.mxu0 %v105
    %v206 = vpop.f32.mrf.mxu0
    %v207 = vadd.f32 0.0, %v206
    %v208 = vpop.f32.mrf.mxu0
    %209 = vmatprep.mubr.f32.mxu0 0.0
    %210 = vmatmul.mubr.f32.gmra.mxu0 %v108
    %v211 = vpop.f32.mrf.mxu0
    %v212 = vadd.f32 0.0, %v211
    %v213 = vpop.f32.mrf.mxu0
    %214 = vdwg.mxu0
    %v216 = vlaneseq
    %v217 = vshrl.u32 %v216, 7
    %v218 = vsub.s32 0, %v217
    %v219 = vrot.slane %v76, %v218
    %v221 = vadd.f32 %v177, %v219
    %v222 = vadd.f32 %v182, %v219
    %v223 = vadd.f32 %v187, %v219
    %v224 = vadd.f32 %v192, %v219
    %v225 = vadd.f32 %v197, %v219
    %v226 = vadd.f32 %v202, %v219
    %v227 = vadd.f32 %v207, %v219
    %v228 = vadd.f32 %v212, %v219
    %229 = vst [vmem:[#allocation2] sm:$0xff] %v221
    %230 = vst [vmem:[#allocation2 + $0x8] sm:$0xff] %v222
    %231 = vst [vmem:[#allocation2 + $0x10] sm:$0xff] %v223
    %232 = vst [vmem:[#allocation2 + $0x18] sm:$0xff] %v224
    %233 = vst [vmem:[#allocation2 + $0x20] sm:$0xff] %v225
    %234 = vst [vmem:[#allocation2 + $0x28] sm:$0xff] %v226
    %235 = vst [vmem:[#allocation2 + $0x30] sm:$0xff] %v227
    %236 = vst [vmem:[#allocation2 + $0x38] sm:$0xff] %v228
    %v237 = vld [vmem:[#allocation3] sm:$0xff]
    %v238 = vld [vmem:[#allocation4] sm:$0xff]
    %v239 = vld [vmem:[#allocation2] sm:$0xff]
    %vm240 = vcmask 261120
    %v242 = vsel %vm240, %v237, 0
    %244 = vmatprep.subr.mxu0 0.0
    %245 = vmatpush1.msra.mxu0 0.0
    %246 = vmatprep.subr.mxu0 0.0
    %247 = vmatpush1.msra.mxu0 0.0
    %248 = vmatprep.subr.mxu0 0.0
    %249 = vmatpush1.msra.mxu0 0.0
    %250 = vmatprep.subr.mxu0 0.0
    %251 = vmatpush1.msra.mxu0 0.0
    %252 = vmatprep.subr.mxu0 0.0
    %253 = vmatpush1.msra.mxu0 0.0
    %254 = vmatprep.subr.mxu0 0.0
    %255 = vmatpush1.msra.mxu0 0.0
    %256 = vmatprep.subr.mxu0 0.0
    %257 = vmatpush1.msra.mxu0 0.0
    %258 = vmatprep.subr.mxu0 0.0
    %259 = vmatpush1.msra.mxu0 0.0
    %260 = vmatprep.subr.mxu0 0.0
    %261 = vmatpush1.msra.mxu0 0.0
    %262 = vmatprep.subr.mxu0 0.0
    %263 = vmatpush1.msra.mxu0 0.0
    %264 = vmatprep.subr.mxu0 0.0
    %265 = vmatpush1.msra.mxu0 0.0
    %266 = vmatprep.subr.mxu0 0.0
    %267 = vmatpush1.msra.mxu0 0.0
    %268 = vmatprep.subr.mxu0 0.0
    %269 = vmatpush1.msra.mxu0 %v75
    %270 = vmatprep.subr.mxu0 0.0
    %271 = vmatpush1.msra.mxu0 %v74
    %272 = vmatprep.subr.mxu0 0.0
    %273 = vmatpush1.msra.mxu0 %v73
    %274 = vmatprep.subr.mxu0 0.0
    %275 = vmatpush1.msra.mxu0 %v72
    %276 = vmatprep.subr.mxu0 0.0
    %277 = vmatpush2.msra.mxu0 0.0
    %278 = vmatprep.subr.mxu0 0.0
    %279 = vmatpush2.msra.mxu0 0.0
    %280 = vmatprep.subr.mxu0 0.0
    %281 = vmatpush2.msra.mxu0 0.0
    %282 = vmatprep.subr.mxu0 0.0
    %283 = vmatpush2.msra.mxu0 0.0
    %284 = vmatprep.subr.mxu0 0.0
    %285 = vmatpush2.msra.mxu0 0.0
    %286 = vmatprep.subr.mxu0 0.0
    %287 = vmatpush2.msra.mxu0 0.0
    %288 = vmatprep.subr.mxu0 0.0
    %289 = vmatpush2.msra.mxu0 0.0
    %290 = vmatprep.subr.mxu0 0.0
    %291 = vmatpush2.msra.mxu0 0.0
    %292 = vmatprep.subr.mxu0 0.0
    %293 = vmatpush2.msra.mxu0 0.0
    %294 = vmatprep.subr.mxu0 0.0
    %295 = vmatpush2.msra.mxu0 0.0
    %296 = vmatprep.subr.mxu0 0.0
    %297 = vmatpush2.msra.mxu0 0.0
    %298 = vmatprep.subr.mxu0 0.0
    %299 = vmatpush2.msra.mxu0 0.0
    %300 = vmatprep.subr.mxu0 0.0
    %301 = vmatpush2.msra.mxu0 0.0
    %302 = vmatprep.subr.mxu0 0.0
    %303 = vmatpush2.msra.mxu0 0.0
    %304 = vmatprep.subr.mxu0 0.0
    %305 = vmatpush2.msra.mxu0 0.0
    %306 = vmatprep.subr.mxu0 0.0
    %307 = vmatpush2.msra.mxu0 0.0
    %308 = vmatprep.mubr.f32.mxu0 0.0
    %309 = vmatmul.mubr.f32.gmra.mxu0 %v242
    %v310 = vpop.f32.mrf.mxu0
    %v311 = vadd.f32 0.0, %v310
    %v312 = vpop.f32.mrf.mxu0
    %313 = vdwg.mxu0
    %v314 = vadd.f32 %v239, %v311
    %v315 = vxor.u32 %v314, 2147483648
    %v316 = vmul.f32 %v315, 1.442695
    %v317 = vpow.pop %v316
    %v318 = vadd.f32 %v317, 1.0
    %v319 = vrcp.pop %v318
    %v320 = vmul.f32 1.0, %v319
    %v321 = vtanh.pop %v314
    %323 = vrot.lane.b32.xlu0 %v238, 32
    %v324 = vpop.permute.xlu0 %323
    %v326 = vmul.f32 %v320, %v324
    %328 = vrot.lane.b32.xlu0 %v321, 64
    %v329 = vpop.permute.xlu0 %328
    %v331 = vmul.f32 %v320, %v329
    %333 = vrot.lane.b32.xlu0 %v331, 32
    %v334 = vpop.permute.xlu0 %333
    %v336 = vadd.f32 %v326, %v334
    %v337 = vtanh.pop %v336
    %339 = vrot.lane.b32.xlu0 %v337, 64
    %v340 = vpop.permute.xlu0 %339
    %v342 = vmul.f32 %v320, %v340
    %344 = vrot.lane.b32.xlu0 %v342, 32
    %v345 = vpop.permute.xlu0 %344
    %347 = vst.msk [vmem:[#allocation11] sm:$0xff] %vm240, %v345
    %s348 = scalar_lea.vmem [#allocation2], 8
    %v349 = vld [vmem:[%s348] sm:$0xff]
    %v350 = vsel %vm240, %v345, 0
    %352 = vmatprep.subr.mxu0 0.0
    %353 = vmatpush1.msra.mxu0 0.0
    %354 = vmatprep.subr.mxu0 0.0
    %355 = vmatpush1.msra.mxu0 0.0
    %356 = vmatprep.subr.mxu0 0.0
    %357 = vmatpush1.msra.mxu0 0.0
    %358 = vmatprep.subr.mxu0 0.0
    %359 = vmatpush1.msra.mxu0 0.0
    %360 = vmatprep.subr.mxu0 0.0
    %361 = vmatpush1.msra.mxu0 0.0
    %362 = vmatprep.subr.mxu0 0.0
    %363 = vmatpush1.msra.mxu0 0.0
    %364 = vmatprep.subr.mxu0 0.0
    %365 = vmatpush1.msra.mxu0 0.0
    %366 = vmatprep.subr.mxu0 0.0
    %367 = vmatpush1.msra.mxu0 0.0
    %368 = vmatprep.subr.mxu0 0.0
    %369 = vmatpush1.msra.mxu0 0.0
    %370 = vmatprep.subr.mxu0 0.0
    %371 = vmatpush1.msra.mxu0 0.0
    %372 = vmatprep.subr.mxu0 0.0
    %373 = vmatpush1.msra.mxu0 0.0
    %374 = vmatprep.subr.mxu0 0.0
    %375 = vmatpush1.msra.mxu0 0.0
    %376 = vmatprep.subr.mxu0 0.0
    %377 = vmatpush1.msra.mxu0 %v75
    %378 = vmatprep.subr.mxu0 0.0
    %379 = vmatpush1.msra.mxu0 %v74
    %380 = vmatprep.subr.mxu0 0.0
    %381 = vmatpush1.msra.mxu0 %v73
    %382 = vmatprep.subr.mxu0 0.0
    %383 = vmatpush1.msra.mxu0 %v72
    %384 = vmatprep.subr.mxu0 0.0
    %385 = vmatpush2.msra.mxu0 0.0
    %386 = vmatprep.subr.mxu0 0.0
    %387 = vmatpush2.msra.mxu0 0.0
    %388 = vmatprep.subr.mxu0 0.0
    %389 = vmatpush2.msra.mxu0 0.0
    %390 = vmatprep.subr.mxu0 0.0
    %391 = vmatpush2.msra.mxu0 0.0
    %392 = vmatprep.subr.mxu0 0.0
    %393 = vmatpush2.msra.mxu0 0.0
    %394 = vmatprep.subr.mxu0 0.0
    %395 = vmatpush2.msra.mxu0 0.0
    %396 = vmatprep.subr.mxu0 0.0
    %397 = vmatpush2.msra.mxu0 0.0
    %398 = vmatprep.subr.mxu0 0.0
    %399 = vmatpush2.msra.mxu0 0.0
    %400 = vmatprep.subr.mxu0 0.0
    %401 = vmatpush2.msra.mxu0 0.0
    %402 = vmatprep.subr.mxu0 0.0
    %403 = vmatpush2.msra.mxu0 0.0
    %404 = vmatprep.subr.mxu0 0.0
    %405 = vmatpush2.msra.mxu0 0.0
    %406 = vmatprep.subr.mxu0 0.0
    %407 = vmatpush2.msra.mxu0 0.0
    %408 = vmatprep.subr.mxu0 0.0
    %409 = vmatpush2.msra.mxu0 0.0
    %410 = vmatprep.subr.mxu0 0.0
    %411 = vmatpush2.msra.mxu0 0.0
    %412 = vmatprep.subr.mxu0 0.0
    %413 = vmatpush2.msra.mxu0 0.0
    %414 = vmatprep.subr.mxu0 0.0
    %415 = vmatpush2.msra.mxu0 0.0
    %416 = vmatprep.mubr.f32.mxu0 0.0
    %417 = vmatmul.mubr.f32.gmra.mxu0 %v350
    %v418 = vpop.f32.mrf.mxu0
    %v419 = vadd.f32 0.0, %v418
    %v420 = vpop.f32.mrf.mxu0
    %421 = vdwg.mxu0
    %v422 = vadd.f32 %v349, %v419
    %v423 = vxor.u32 %v422, 2147483648
    %v424 = vmul.f32 %v423, 1.442695
    %v425 = vpow.pop %v424
    %v426 = vadd.f32 %v425, 1.0
    %v427 = vrcp.pop %v426
    %v428 = vmul.f32 1.0, %v427
    %v429 = vtanh.pop %v422
    %v430 = vmul.f32 %v428, %v336
    %432 = vrot.lane.b32.xlu0 %v429, 64
    %v433 = vpop.permute.xlu0 %432
    %v435 = vmul.f32 %v428, %v433
    %437 = vrot.lane.b32.xlu0 %v435, 32
    %v438 = vpop.permute.xlu0 %437
    %v440 = vadd.f32 %v430, %v438
    %v441 = vtanh.pop %v440
    %443 = vrot.lane.b32.xlu0 %v441, 64
    %v444 = vpop.permute.xlu0 %443
    %v446 = vmul.f32 %v428, %v444
    %448 = vrot.lane.b32.xlu0 %v446, 32
    %v449 = vpop.permute.xlu0 %448
    %s451 = scalar_lea.vmem [#allocation11], 8
    %452 = vst.msk [vmem:[%s451] sm:$0xff] %vm240, %v449
    %s453 = scalar_lea.vmem [#allocation2], 16
    %v454 = vld [vmem:[%s453] sm:$0xff]
    %v455 = vsel %vm240, %v449, 0
    %457 = vmatprep.subr.mxu0 0.0
    %458 = vmatpush1.msra.mxu0 0.0
    %459 = vmatprep.subr.mxu0 0.0
    %460 = vmatpush1.msra.mxu0 0.0
    %461 = vmatprep.subr.mxu0 0.0
    %462 = vmatpush1.msra.mxu0 0.0
    %463 = vmatprep.subr.mxu0 0.0
    %464 = vmatpush1.msra.mxu0 0.0
    %465 = vmatprep.subr.mxu0 0.0
    %466 = vmatpush1.msra.mxu0 0.0
    %467 = vmatprep.subr.mxu0 0.0
    %468 = vmatpush1.msra.mxu0 0.0
    %469 = vmatprep.subr.mxu0 0.0
    %470 = vmatpush1.msra.mxu0 0.0
    %471 = vmatprep.subr.mxu0 0.0
    %472 = vmatpush1.msra.mxu0 0.0
    %473 = vmatprep.subr.mxu0 0.0
    %474 = vmatpush1.msra.mxu0 0.0
    %475 = vmatprep.subr.mxu0 0.0
    %476 = vmatpush1.msra.mxu0 0.0
    %477 = vmatprep.subr.mxu0 0.0
    %478 = vmatpush1.msra.mxu0 0.0
    %479 = vmatprep.subr.mxu0 0.0
    %480 = vmatpush1.msra.mxu0 0.0
    %481 = vmatprep.subr.mxu0 0.0
    %482 = vmatpush1.msra.mxu0 %v75
    %483 = vmatprep.subr.mxu0 0.0
    %484 = vmatpush1.msra.mxu0 %v74
    %485 = vmatprep.subr.mxu0 0.0
    %486 = vmatpush1.msra.mxu0 %v73
    %487 = vmatprep.subr.mxu0 0.0
    %488 = vmatpush1.msra.mxu0 %v72
    %489 = vmatprep.subr.mxu0 0.0
    %490 = vmatpush2.msra.mxu0 0.0
    %491 = vmatprep.subr.mxu0 0.0
    %492 = vmatpush2.msra.mxu0 0.0
    %493 = vmatprep.subr.mxu0 0.0
    %494 = vmatpush2.msra.mxu0 0.0
    %495 = vmatprep.subr.mxu0 0.0
    %496 = vmatpush2.msra.mxu0 0.0
    %497 = vmatprep.subr.mxu0 0.0
    %498 = vmatpush2.msra.mxu0 0.0
    %499 = vmatprep.subr.mxu0 0.0
    %500 = vmatpush2.msra.mxu0 0.0
    %501 = vmatprep.subr.mxu0 0.0
    %502 = vmatpush2.msra.mxu0 0.0
    %503 = vmatprep.subr.mxu0 0.0
    %504 = vmatpush2.msra.mxu0 0.0
    %505 = vmatprep.subr.mxu0 0.0
    %506 = vmatpush2.msra.mxu0 0.0
    %507 = vmatprep.subr.mxu0 0.0
    %508 = vmatpush2.msra.mxu0 0.0
    %509 = vmatprep.subr.mxu0 0.0
    %510 = vmatpush2.msra.mxu0 0.0
    %511 = vmatprep.subr.mxu0 0.0
    %512 = vmatpush2.msra.mxu0 0.0
    %513 = vmatprep.subr.mxu0 0.0
    %514 = vmatpush2.msra.mxu0 0.0
    %515 = vmatprep.subr.mxu0 0.0
    %516 = vmatpush2.msra.mxu0 0.0
    %517 = vmatprep.subr.mxu0 0.0
    %518 = vmatpush2.msra.mxu0 0.0
    %519 = vmatprep.subr.mxu0 0.0
    %520 = vmatpush2.msra.mxu0 0.0
    %521 = vmatprep.mubr.f32.mxu0 0.0
    %522 = vmatmul.mubr.f32.gmra.mxu0 %v455
    %v523 = vpop.f32.mrf.mxu0
    %v524 = vadd.f32 0.0, %v523
    %v525 = vpop.f32.mrf.mxu0
    %526 = vdwg.mxu0
    %v527 = vadd.f32 %v454, %v524
    %v528 = vxor.u32 %v527, 2147483648
    %v529 = vmul.f32 %v528, 1.442695
    %v530 = vpow.pop %v529
    %v531 = vadd.f32 %v530, 1.0
    %v532 = vrcp.pop %v531
    %v533 = vmul.f32 1.0, %v532
    %v534 = vtanh.pop %v527
    %v535 = vmul.f32 %v533, %v440
    %537 = vrot.lane.b32.xlu0 %v534, 64
    %v538 = vpop.permute.xlu0 %537
    %v540 = vmul.f32 %v533, %v538
    %542 = vrot.lane.b32.xlu0 %v540, 32
    %v543 = vpop.permute.xlu0 %542
    %v545 = vadd.f32 %v535, %v543
    %v546 = vtanh.pop %v545
    %548 = vrot.lane.b32.xlu0 %v546, 64
    %v549 = vpop.permute.xlu0 %548
    %v551 = vmul.f32 %v533, %v549
    %553 = vrot.lane.b32.xlu0 %v551, 32
    %v554 = vpop.permute.xlu0 %553
    %s556 = scalar_lea.vmem [#allocation11], 16
    %557 = vst.msk [vmem:[%s556] sm:$0xff] %vm240, %v554
    %s558 = scalar_lea.vmem [#allocation2], 24
    %v559 = vld [vmem:[%s558] sm:$0xff]
    %v560 = vsel %vm240, %v554, 0
    %562 = vmatprep.subr.mxu0 0.0
    %563 = vmatpush1.msra.mxu0 0.0
    %564 = vmatprep.subr.mxu0 0.0
    %565 = vmatpush1.msra.mxu0 0.0
    %566 = vmatprep.subr.mxu0 0.0
    %567 = vmatpush1.msra.mxu0 0.0
    %568 = vmatprep.subr.mxu0 0.0
    %569 = vmatpush1.msra.mxu0 0.0
    %570 = vmatprep.subr.mxu0 0.0
    %571 = vmatpush1.msra.mxu0 0.0
    %572 = vmatprep.subr.mxu0 0.0
    %573 = vmatpush1.msra.mxu0 0.0
    %574 = vmatprep.subr.mxu0 0.0
    %575 = vmatpush1.msra.mxu0 0.0
    %576 = vmatprep.subr.mxu0 0.0
    %577 = vmatpush1.msra.mxu0 0.0
    %578 = vmatprep.subr.mxu0 0.0
    %579 = vmatpush1.msra.mxu0 0.0
    %580 = vmatprep.subr.mxu0 0.0
    %581 = vmatpush1.msra.mxu0 0.0
    %582 = vmatprep.subr.mxu0 0.0
    %583 = vmatpush1.msra.mxu0 0.0
    %584 = vmatprep.subr.mxu0 0.0
    %585 = vmatpush1.msra.mxu0 0.0
    %586 = vmatprep.subr.mxu0 0.0
    %587 = vmatpush1.msra.mxu0 %v75
    %588 = vmatprep.subr.mxu0 0.0
    %589 = vmatpush1.msra.mxu0 %v74
    %590 = vmatprep.subr.mxu0 0.0
    %591 = vmatpush1.msra.mxu0 %v73
    %592 = vmatprep.subr.mxu0 0.0
    %593 = vmatpush1.msra.mxu0 %v72
    %594 = vmatprep.subr.mxu0 0.0
    %595 = vmatpush2.msra.mxu0 0.0
    %596 = vmatprep.subr.mxu0 0.0
    %597 = vmatpush2.msra.mxu0 0.0
    %598 = vmatprep.subr.mxu0 0.0
    %599 = vmatpush2.msra.mxu0 0.0
    %600 = vmatprep.subr.mxu0 0.0
    %601 = vmatpush2.msra.mxu0 0.0
    %602 = vmatprep.subr.mxu0 0.0
    %603 = vmatpush2.msra.mxu0 0.0
    %604 = vmatprep.subr.mxu0 0.0
    %605 = vmatpush2.msra.mxu0 0.0
    %606 = vmatprep.subr.mxu0 0.0
    %607 = vmatpush2.msra.mxu0 0.0
    %608 = vmatprep.subr.mxu0 0.0
    %609 = vmatpush2.msra.mxu0 0.0
    %610 = vmatprep.subr.mxu0 0.0
    %611 = vmatpush2.msra.mxu0 0.0
    %612 = vmatprep.subr.mxu0 0.0
    %613 = vmatpush2.msra.mxu0 0.0
    %614 = vmatprep.subr.mxu0 0.0
    %615 = vmatpush2.msra.mxu0 0.0
    %616 = vmatprep.subr.mxu0 0.0
    %617 = vmatpush2.msra.mxu0 0.0
    %618 = vmatprep.subr.mxu0 0.0
    %619 = vmatpush2.msra.mxu0 0.0
    %620 = vmatprep.subr.mxu0 0.0
    %621 = vmatpush2.msra.mxu0 0.0
    %622 = vmatprep.subr.mxu0 0.0
    %623 = vmatpush2.msra.mxu0 0.0
    %624 = vmatprep.subr.mxu0 0.0
    %625 = vmatpush2.msra.mxu0 0.0
    %626 = vmatprep.mubr.f32.mxu0 0.0
    %627 = vmatmul.mubr.f32.gmra.mxu0 %v560
    %v628 = vpop.f32.mrf.mxu0
    %v629 = vadd.f32 0.0, %v628
    %v630 = vpop.f32.mrf.mxu0
    %631 = vdwg.mxu0
    %v632 = vadd.f32 %v559, %v629
    %v633 = vxor.u32 %v632, 2147483648
    %v634 = vmul.f32 %v633, 1.442695
    %v635 = vpow.pop %v634
    %v636 = vadd.f32 %v635, 1.0
    %v637 = vrcp.pop %v636
    %v638 = vmul.f32 1.0, %v637
    %v639 = vtanh.pop %v632
    %v640 = vmul.f32 %v638, %v545
    %642 = vrot.lane.b32.xlu0 %v639, 64
    %v643 = vpop.permute.xlu0 %642
    %v645 = vmul.f32 %v638, %v643
    %647 = vrot.lane.b32.xlu0 %v645, 32
    %v648 = vpop.permute.xlu0 %647
    %v650 = vadd.f32 %v640, %v648
    %v651 = vtanh.pop %v650
    %653 = vrot.lane.b32.xlu0 %v651, 64
    %v654 = vpop.permute.xlu0 %653
    %v656 = vmul.f32 %v638, %v654
    %658 = vrot.lane.b32.xlu0 %v656, 32
    %v659 = vpop.permute.xlu0 %658
    %s661 = scalar_lea.vmem [#allocation11], 24
    %662 = vst.msk [vmem:[%s661] sm:$0xff] %vm240, %v659
    %s663 = scalar_lea.vmem [#allocation2], 32
    %v664 = vld [vmem:[%s663] sm:$0xff]
    %v665 = vsel %vm240, %v659, 0
    %667 = vmatprep.subr.mxu0 0.0
    %668 = vmatpush1.msra.mxu0 0.0
    %669 = vmatprep.subr.mxu0 0.0
    %670 = vmatpush1.msra.mxu0 0.0
    %671 = vmatprep.subr.mxu0 0.0
    %672 = vmatpush1.msra.mxu0 0.0
    %673 = vmatprep.subr.mxu0 0.0
    %674 = vmatpush1.msra.mxu0 0.0
    %675 = vmatprep.subr.mxu0 0.0
    %676 = vmatpush1.msra.mxu0 0.0
    %677 = vmatprep.subr.mxu0 0.0
    %678 = vmatpush1.msra.mxu0 0.0
    %679 = vmatprep.subr.mxu0 0.0
    %680 = vmatpush1.msra.mxu0 0.0
    %681 = vmatprep.subr.mxu0 0.0
    %682 = vmatpush1.msra.mxu0 0.0
    %683 = vmatprep.subr.mxu0 0.0
    %684 = vmatpush1.msra.mxu0 0.0
    %685 = vmatprep.subr.mxu0 0.0
    %686 = vmatpush1.msra.mxu0 0.0
    %687 = vmatprep.subr.mxu0 0.0
    %688 = vmatpush1.msra.mxu0 0.0
    %689 = vmatprep.subr.mxu0 0.0
    %690 = vmatpush1.msra.mxu0 0.0
    %691 = vmatprep.subr.mxu0 0.0
    %692 = vmatpush1.msra.mxu0 %v75
    %693 = vmatprep.subr.mxu0 0.0
    %694 = vmatpush1.msra.mxu0 %v74
    %695 = vmatprep.subr.mxu0 0.0
    %696 = vmatpush1.msra.mxu0 %v73
    %697 = vmatprep.subr.mxu0 0.0
    %698 = vmatpush1.msra.mxu0 %v72
    %699 = vmatprep.subr.mxu0 0.0
    %700 = vmatpush2.msra.mxu0 0.0
    %701 = vmatprep.subr.mxu0 0.0
    %702 = vmatpush2.msra.mxu0 0.0
    %703 = vmatprep.subr.mxu0 0.0
    %704 = vmatpush2.msra.mxu0 0.0
    %705 = vmatprep.subr.mxu0 0.0
    %706 = vmatpush2.msra.mxu0 0.0
    %707 = vmatprep.subr.mxu0 0.0
    %708 = vmatpush2.msra.mxu0 0.0
    %709 = vmatprep.subr.mxu0 0.0
    %710 = vmatpush2.msra.mxu0 0.0
    %711 = vmatprep.subr.mxu0 0.0
    %712 = vmatpush2.msra.mxu0 0.0
    %713 = vmatprep.subr.mxu0 0.0
    %714 = vmatpush2.msra.mxu0 0.0
    %715 = vmatprep.subr.mxu0 0.0
    %716 = vmatpush2.msra.mxu0 0.0
    %717 = vmatprep.subr.mxu0 0.0
    %718 = vmatpush2.msra.mxu0 0.0
    %719 = vmatprep.subr.mxu0 0.0
    %720 = vmatpush2.msra.mxu0 0.0
    %721 = vmatprep.subr.mxu0 0.0
    %722 = vmatpush2.msra.mxu0 0.0
    %723 = vmatprep.subr.mxu0 0.0
    %724 = vmatpush2.msra.mxu0 0.0
    %725 = vmatprep.subr.mxu0 0.0
    %726 = vmatpush2.msra.mxu0 0.0
    %727 = vmatprep.subr.mxu0 0.0
    %728 = vmatpush2.msra.mxu0 0.0
    %729 = vmatprep.subr.mxu0 0.0
    %730 = vmatpush2.msra.mxu0 0.0
    %731 = vmatprep.mubr.f32.mxu0 0.0
    %732 = vmatmul.mubr.f32.gmra.mxu0 %v665
    %v733 = vpop.f32.mrf.mxu0
    %v734 = vadd.f32 0.0, %v733
    %v735 = vpop.f32.mrf.mxu0
    %736 = vdwg.mxu0
    %v737 = vadd.f32 %v664, %v734
    %v738 = vxor.u32 %v737, 2147483648
    %v739 = vmul.f32 %v738, 1.442695
    %v740 = vpow.pop %v739
    %v741 = vadd.f32 %v740, 1.0
    %v742 = vrcp.pop %v741
    %v743 = vmul.f32 1.0, %v742
    %v744 = vtanh.pop %v737
    %v745 = vmul.f32 %v743, %v650
    %747 = vrot.lane.b32.xlu0 %v744, 64
    %v748 = vpop.permute.xlu0 %747
    %v750 = vmul.f32 %v743, %v748
    %752 = vrot.lane.b32.xlu0 %v750, 32
    %v753 = vpop.permute.xlu0 %752
    %v755 = vadd.f32 %v745, %v753
    %v756 = vtanh.pop %v755
    %758 = vrot.lane.b32.xlu0 %v756, 64
    %v759 = vpop.permute.xlu0 %758
    %v761 = vmul.f32 %v743, %v759
    %763 = vrot.lane.b32.xlu0 %v761, 32
    %v764 = vpop.permute.xlu0 %763
    %s766 = scalar_lea.vmem [#allocation11], 32
    %767 = vst.msk [vmem:[%s766] sm:$0xff] %vm240, %v764
    %s768 = scalar_lea.vmem [#allocation2], 40
    %v769 = vld [vmem:[%s768] sm:$0xff]
    %v770 = vsel %vm240, %v764, 0
    %772 = vmatprep.subr.mxu0 0.0
    %773 = vmatpush1.msra.mxu0 0.0
    %774 = vmatprep.subr.mxu0 0.0
    %775 = vmatpush1.msra.mxu0 0.0
    %776 = vmatprep.subr.mxu0 0.0
    %777 = vmatpush1.msra.mxu0 0.0
    %778 = vmatprep.subr.mxu0 0.0
    %779 = vmatpush1.msra.mxu0 0.0
    %780 = vmatprep.subr.mxu0 0.0
    %781 = vmatpush1.msra.mxu0 0.0
    %782 = vmatprep.subr.mxu0 0.0
    %783 = vmatpush1.msra.mxu0 0.0
    %784 = vmatprep.subr.mxu0 0.0
    %785 = vmatpush1.msra.mxu0 0.0
    %786 = vmatprep.subr.mxu0 0.0
    %787 = vmatpush1.msra.mxu0 0.0
    %788 = vmatprep.subr.mxu0 0.0
    %789 = vmatpush1.msra.mxu0 0.0
    %790 = vmatprep.subr.mxu0 0.0
    %791 = vmatpush1.msra.mxu0 0.0
    %792 = vmatprep.subr.mxu0 0.0
    %793 = vmatpush1.msra.mxu0 0.0
    %794 = vmatprep.subr.mxu0 0.0
    %795 = vmatpush1.msra.mxu0 0.0
    %796 = vmatprep.subr.mxu0 0.0
    %797 = vmatpush1.msra.mxu0 %v75
    %798 = vmatprep.subr.mxu0 0.0
    %799 = vmatpush1.msra.mxu0 %v74
    %800 = vmatprep.subr.mxu0 0.0
    %801 = vmatpush1.msra.mxu0 %v73
    %802 = vmatprep.subr.mxu0 0.0
    %803 = vmatpush1.msra.mxu0 %v72
    %804 = vmatprep.subr.mxu0 0.0
    %805 = vmatpush2.msra.mxu0 0.0
    %806 = vmatprep.subr.mxu0 0.0
    %807 = vmatpush2.msra.mxu0 0.0
    %808 = vmatprep.subr.mxu0 0.0
    %809 = vmatpush2.msra.mxu0 0.0
    %810 = vmatprep.subr.mxu0 0.0
    %811 = vmatpush2.msra.mxu0 0.0
    %812 = vmatprep.subr.mxu0 0.0
    %813 = vmatpush2.msra.mxu0 0.0
    %814 = vmatprep.subr.mxu0 0.0
    %815 = vmatpush2.msra.mxu0 0.0
    %816 = vmatprep.subr.mxu0 0.0
    %817 = vmatpush2.msra.mxu0 0.0
    %818 = vmatprep.subr.mxu0 0.0
    %819 = vmatpush2.msra.mxu0 0.0
    %820 = vmatprep.subr.mxu0 0.0
    %821 = vmatpush2.msra.mxu0 0.0
    %822 = vmatprep.subr.mxu0 0.0
    %823 = vmatpush2.msra.mxu0 0.0
    %824 = vmatprep.subr.mxu0 0.0
    %825 = vmatpush2.msra.mxu0 0.0
    %826 = vmatprep.subr.mxu0 0.0
    %827 = vmatpush2.msra.mxu0 0.0
    %828 = vmatprep.subr.mxu0 0.0
    %829 = vmatpush2.msra.mxu0 0.0
    %830 = vmatprep.subr.mxu0 0.0
    %831 = vmatpush2.msra.mxu0 0.0
    %832 = vmatprep.subr.mxu0 0.0
    %833 = vmatpush2.msra.mxu0 0.0
    %834 = vmatprep.subr.mxu0 0.0
    %835 = vmatpush2.msra.mxu0 0.0
    %836 = vmatprep.mubr.f32.mxu0 0.0
    %837 = vmatmul.mubr.f32.gmra.mxu0 %v770
    %v838 = vpop.f32.mrf.mxu0
    %v839 = vadd.f32 0.0, %v838
    %v840 = vpop.f32.mrf.mxu0
    %841 = vdwg.mxu0
    %v842 = vadd.f32 %v769, %v839
    %v843 = vxor.u32 %v842, 2147483648
    %v844 = vmul.f32 %v843, 1.442695
    %v845 = vpow.pop %v844
    %v846 = vadd.f32 %v845, 1.0
    %v847 = vrcp.pop %v846
    %v848 = vmul.f32 1.0, %v847
    %v849 = vtanh.pop %v842
    %v850 = vmul.f32 %v848, %v755
    %852 = vrot.lane.b32.xlu0 %v849, 64
    %v853 = vpop.permute.xlu0 %852
    %v855 = vmul.f32 %v848, %v853
    %857 = vrot.lane.b32.xlu0 %v855, 32
    %v858 = vpop.permute.xlu0 %857
    %v860 = vadd.f32 %v850, %v858
    %v861 = vtanh.pop %v860
    %863 = vrot.lane.b32.xlu0 %v861, 64
    %v864 = vpop.permute.xlu0 %863
    %v866 = vmul.f32 %v848, %v864
    %868 = vrot.lane.b32.xlu0 %v866, 32
    %v869 = vpop.permute.xlu0 %868
    %s871 = scalar_lea.vmem [#allocation11], 40
    %872 = vst.msk [vmem:[%s871] sm:$0xff] %vm240, %v869
    %s873 = scalar_lea.vmem [#allocation2], 48
    %v874 = vld [vmem:[%s873] sm:$0xff]
    %v875 = vsel %vm240, %v869, 0
    %877 = vmatprep.subr.mxu0 0.0
    %878 = vmatpush1.msra.mxu0 0.0
    %879 = vmatprep.subr.mxu0 0.0
    %880 = vmatpush1.msra.mxu0 0.0
    %881 = vmatprep.subr.mxu0 0.0
    %882 = vmatpush1.msra.mxu0 0.0
    %883 = vmatprep.subr.mxu0 0.0
    %884 = vmatpush1.msra.mxu0 0.0
    %885 = vmatprep.subr.mxu0 0.0
    %886 = vmatpush1.msra.mxu0 0.0
    %887 = vmatprep.subr.mxu0 0.0
    %888 = vmatpush1.msra.mxu0 0.0
    %889 = vmatprep.subr.mxu0 0.0
    %890 = vmatpush1.msra.mxu0 0.0
    %891 = vmatprep.subr.mxu0 0.0
    %892 = vmatpush1.msra.mxu0 0.0
    %893 = vmatprep.subr.mxu0 0.0
    %894 = vmatpush1.msra.mxu0 0.0
    %895 = vmatprep.subr.mxu0 0.0
    %896 = vmatpush1.msra.mxu0 0.0
    %897 = vmatprep.subr.mxu0 0.0
    %898 = vmatpush1.msra.mxu0 0.0
    %899 = vmatprep.subr.mxu0 0.0
    %900 = vmatpush1.msra.mxu0 0.0
    %901 = vmatprep.subr.mxu0 0.0
    %902 = vmatpush1.msra.mxu0 %v75
    %903 = vmatprep.subr.mxu0 0.0
    %904 = vmatpush1.msra.mxu0 %v74
    %905 = vmatprep.subr.mxu0 0.0
    %906 = vmatpush1.msra.mxu0 %v73
    %907 = vmatprep.subr.mxu0 0.0
    %908 = vmatpush1.msra.mxu0 %v72
    %909 = vmatprep.subr.mxu0 0.0
    %910 = vmatpush2.msra.mxu0 0.0
    %911 = vmatprep.subr.mxu0 0.0
    %912 = vmatpush2.msra.mxu0 0.0
    %913 = vmatprep.subr.mxu0 0.0
    %914 = vmatpush2.msra.mxu0 0.0
    %915 = vmatprep.subr.mxu0 0.0
    %916 = vmatpush2.msra.mxu0 0.0
    %917 = vmatprep.subr.mxu0 0.0
    %918 = vmatpush2.msra.mxu0 0.0
    %919 = vmatprep.subr.mxu0 0.0
    %920 = vmatpush2.msra.mxu0 0.0
    %921 = vmatprep.subr.mxu0 0.0
    %922 = vmatpush2.msra.mxu0 0.0
    %923 = vmatprep.subr.mxu0 0.0
    %924 = vmatpush2.msra.mxu0 0.0
    %925 = vmatprep.subr.mxu0 0.0
    %926 = vmatpush2.msra.mxu0 0.0
    %927 = vmatprep.subr.mxu0 0.0
    %928 = vmatpush2.msra.mxu0 0.0
    %929 = vmatprep.subr.mxu0 0.0
    %930 = vmatpush2.msra.mxu0 0.0
    %931 = vmatprep.subr.mxu0 0.0
    %932 = vmatpush2.msra.mxu0 0.0
    %933 = vmatprep.subr.mxu0 0.0
    %934 = vmatpush2.msra.mxu0 0.0
    %935 = vmatprep.subr.mxu0 0.0
    %936 = vmatpush2.msra.mxu0 0.0
    %937 = vmatprep.subr.mxu0 0.0
    %938 = vmatpush2.msra.mxu0 0.0
    %939 = vmatprep.subr.mxu0 0.0
    %940 = vmatpush2.msra.mxu0 0.0
    %941 = vmatprep.mubr.f32.mxu0 0.0
    %942 = vmatmul.mubr.f32.gmra.mxu0 %v875
    %v943 = vpop.f32.mrf.mxu0
    %v944 = vadd.f32 0.0, %v943
    %v945 = vpop.f32.mrf.mxu0
    %946 = vdwg.mxu0
    %v947 = vadd.f32 %v874, %v944
    %v948 = vxor.u32 %v947, 2147483648
    %v949 = vmul.f32 %v948, 1.442695
    %v950 = vpow.pop %v949
    %v951 = vadd.f32 %v950, 1.0
    %v952 = vrcp.pop %v951
    %v953 = vmul.f32 1.0, %v952
    %v954 = vtanh.pop %v947
    %v955 = vmul.f32 %v953, %v860
    %957 = vrot.lane.b32.xlu0 %v954, 64
    %v958 = vpop.permute.xlu0 %957
    %v960 = vmul.f32 %v953, %v958
    %962 = vrot.lane.b32.xlu0 %v960, 32
    %v963 = vpop.permute.xlu0 %962
    %v965 = vadd.f32 %v955, %v963
    %v966 = vtanh.pop %v965
    %968 = vrot.lane.b32.xlu0 %v966, 64
    %v969 = vpop.permute.xlu0 %968
    %v971 = vmul.f32 %v953, %v969
    %973 = vrot.lane.b32.xlu0 %v971, 32
    %v974 = vpop.permute.xlu0 %973
    %s976 = scalar_lea.vmem [#allocation11], 48
    %977 = vst.msk [vmem:[%s976] sm:$0xff] %vm240, %v974
    %s978 = scalar_lea.vmem [#allocation2], 56
    %v979 = vld [vmem:[%s978] sm:$0xff]
    %v980 = vsel %vm240, %v974, 0
    %982 = vmatprep.subr.mxu0 0.0
    %983 = vmatpush1.msra.mxu0 0.0
    %984 = vmatprep.subr.mxu0 0.0
    %985 = vmatpush1.msra.mxu0 0.0
    %986 = vmatprep.subr.mxu0 0.0
    %987 = vmatpush1.msra.mxu0 0.0
    %988 = vmatprep.subr.mxu0 0.0
    %989 = vmatpush1.msra.mxu0 0.0
    %990 = vmatprep.subr.mxu0 0.0
    %991 = vmatpush1.msra.mxu0 0.0
    %992 = vmatprep.subr.mxu0 0.0
    %993 = vmatpush1.msra.mxu0 0.0
    %994 = vmatprep.subr.mxu0 0.0
    %995 = vmatpush1.msra.mxu0 0.0
    %996 = vmatprep.subr.mxu0 0.0
    %997 = vmatpush1.msra.mxu0 0.0
    %998 = vmatprep.subr.mxu0 0.0
    %999 = vmatpush1.msra.mxu0 0.0
    %1000 = vmatprep.subr.mxu0 0.0
    %1001 = vmatpush1.msra.mxu0 0.0
    %1002 = vmatprep.subr.mxu0 0.0
    %1003 = vmatpush1.msra.mxu0 0.0
    %1004 = vmatprep.subr.mxu0 0.0
    %1005 = vmatpush1.msra.mxu0 0.0
    %1006 = vmatprep.subr.mxu0 0.0
    %1007 = vmatpush1.msra.mxu0 %v75
    %1008 = vmatprep.subr.mxu0 0.0
    %1009 = vmatpush1.msra.mxu0 %v74
    %1010 = vmatprep.subr.mxu0 0.0
    %1011 = vmatpush1.msra.mxu0 %v73
    %1012 = vmatprep.subr.mxu0 0.0
    %1013 = vmatpush1.msra.mxu0 %v72
    %1014 = vmatprep.subr.mxu0 0.0
    %1015 = vmatpush2.msra.mxu0 0.0
    %1016 = vmatprep.subr.mxu0 0.0
    %1017 = vmatpush2.msra.mxu0 0.0
    %1018 = vmatprep.subr.mxu0 0.0
    %1019 = vmatpush2.msra.mxu0 0.0
    %1020 = vmatprep.subr.mxu0 0.0
    %1021 = vmatpush2.msra.mxu0 0.0
    %1022 = vmatprep.subr.mxu0 0.0
    %1023 = vmatpush2.msra.mxu0 0.0
    %1024 = vmatprep.subr.mxu0 0.0
    %1025 = vmatpush2.msra.mxu0 0.0
    %1026 = vmatprep.subr.mxu0 0.0
    %1027 = vmatpush2.msra.mxu0 0.0
    %1028 = vmatprep.subr.mxu0 0.0
    %1029 = vmatpush2.msra.mxu0 0.0
    %1030 = vmatprep.subr.mxu0 0.0
    %1031 = vmatpush2.msra.mxu0 0.0
    %1032 = vmatprep.subr.mxu0 0.0
    %1033 = vmatpush2.msra.mxu0 0.0
    %1034 = vmatprep.subr.mxu0 0.0
    %1035 = vmatpush2.msra.mxu0 0.0
    %1036 = vmatprep.subr.mxu0 0.0
    %1037 = vmatpush2.msra.mxu0 0.0
    %1038 = vmatprep.subr.mxu0 0.0
    %1039 = vmatpush2.msra.mxu0 0.0
    %1040 = vmatprep.subr.mxu0 0.0
    %1041 = vmatpush2.msra.mxu0 0.0
    %1042 = vmatprep.subr.mxu0 0.0
    %1043 = vmatpush2.msra.mxu0 0.0
    %1044 = vmatprep.subr.mxu0 0.0
    %1045 = vmatpush2.msra.mxu0 0.0
    %1046 = vmatprep.mubr.f32.mxu0 0.0
    %1047 = vmatmul.mubr.f32.gmra.mxu0 %v980
    %v1048 = vpop.f32.mrf.mxu0
    %v1049 = vadd.f32 0.0, %v1048
    %v1050 = vpop.f32.mrf.mxu0
    %1051 = vdwg.mxu0
    %v1052 = vadd.f32 %v979, %v1049
    %v1053 = vxor.u32 %v1052, 2147483648
    %v1054 = vmul.f32 %v1053, 1.442695
    %v1055 = vpow.pop %v1054
    %v1056 = vadd.f32 %v1055, 1.0
    %v1057 = vrcp.pop %v1056
    %v1058 = vmul.f32 1.0, %v1057
    %v1059 = vtanh.pop %v1052
    %v1060 = vmul.f32 %v1058, %v965
    %1062 = vrot.lane.b32.xlu0 %v1059, 64
    %v1063 = vpop.permute.xlu0 %1062
    %v1065 = vmul.f32 %v1058, %v1063
    %1067 = vrot.lane.b32.xlu0 %v1065, 32
    %v1068 = vpop.permute.xlu0 %1067
    %v1070 = vadd.f32 %v1060, %v1068
    %v1071 = vtanh.pop %v1070
    %1073 = vrot.lane.b32.xlu0 %v1071, 64
    %v1074 = vpop.permute.xlu0 %1073
    %v1076 = vmul.f32 %v1058, %v1074
    %1078 = vrot.lane.b32.xlu0 %v1076, 32
    %v1079 = vpop.permute.xlu0 %1078
    %s1081 = scalar_lea.vmem [#allocation11], 56
    %1082 = vst.msk [vmem:[%s1081] sm:$0xff] %vm240, %v1079
    %1083 = vst.msk [vmem:[#allocation3] sm:$0xff] %vm240, %v1079
    %1085 = vrot.lane.b32.xlu0 %v1070, 96
    %v1086 = vpop.permute.xlu0 %1085
    %1088 = vst.msk [vmem:[#allocation4] sm:$0xff] %vm240, %v1086
    // Predicated region
    $region34: #{tpu_custom_call.1} parent=1 // pred_check
      %p1089 = pneg %p63
    $region35: #{tpu_custom_call.1} parent=1 // pred_check_branch
      %1091 = sbr.rel (%p1089) target = $region37
    $region36: #{tpu_custom_call.1} parent=1 // pred_region
      %1092 = vst.msk [vmem:[#allocation12] sm:$0xff] %vm240, %v1079
      %1093 = vst.msk [vmem:[#allocation14] sm:$0xff] %vm240, %v1086
    $region37: #{tpu_custom_call.1} parent=1 // pred_fallthru
      _
    // Predicated region
    $region38: #{tpu_custom_call.1} parent=1 // pred_check
      _
    $region39: #{tpu_custom_call.1} parent=1 // pred_check_branch
      %1095 = sbr.rel (0) target = $region41
    $region40: #{tpu_custom_call.1} parent=1 // pred_region
      %s1097 = ssub.s32 1024, 1024
      %1098 = vsyncadd [#allocation7], %s1097
      %s1099 = sshll.u32 [#allocation11], 4
      %s1100 = int_to_ptr.vmem [resolvable:$true] %s1099
      %1105 = dma.vmem_to_hbm [thread:$0]  %s1100, 1024, %s4, [#allocation7], 128, 128, 8
    $region41: #{tpu_custom_call.1} parent=1 // pred_fallthru
      _
    // Predicated region
    $region42: #{tpu_custom_call.1} parent=1 // pred_check
      _
    $region43: #{tpu_custom_call.1} parent=1 // pred_check_branch
      %1107 = sbr.rel (0) target = $region45
    $region44: #{tpu_custom_call.1} parent=1 // pred_region
      %s1109 = ssub.s32 128, 128
      %1110 = vsyncadd [#allocation13], %s1109
      %s1112 = sshll.u32 [#allocation12], 4
      %s1113 = int_to_ptr.vmem [resolvable:$true] %s1112
      %1115 = dma.vmem_to_hbm [thread:$0]  %s1113, 128, %s5, [#allocation13]
    $region45: #{tpu_custom_call.1} parent=1 // pred_fallthru
      _
    // Predicated region
    $region46: #{tpu_custom_call.1} parent=1 // pred_check
      _
    $region47: #{tpu_custom_call.1} parent=1 // pred_check_branch
      %1117 = sbr.rel (0) target = $region49
    $region48: #{tpu_custom_call.1} parent=1 // pred_region
      %s1119 = ssub.s32 128, 128
      %1120 = vsyncadd [#allocation13], %s1119
      %s1122 = sshll.u32 [#allocation14], 4
      %s1123 = int_to_ptr.vmem [resolvable:$true] %s1122
      %1125 = dma.vmem_to_hbm [thread:$0]  %s1123, 128, %s6, [#allocation13]
    $region49: #{tpu_custom_call.1} parent=1 // pred_fallthru
      _
    // Predicated region
    $region50: #{tpu_custom_call.1} parent=1 // pred_check
      _
    $region51: #{tpu_custom_call.1} parent=1 // pred_check_branch
      %1127 = sbr.rel (0) target = $region53
    $region52: #{tpu_custom_call.1} parent=1 // pred_region
      %1128 = dma.done [#allocation7], 1024
    $region53: #{tpu_custom_call.1} parent=1 // pred_fallthru
      _
    // Predicated region
    $region54: #{tpu_custom_call.1} parent=1 // pred_check
      _
    $region55: #{tpu_custom_call.1} parent=1 // pred_check_branch
      %1130 = sbr.rel (0) target = $region57
    $region56: #{tpu_custom_call.1} parent=1 // pred_region
      %1131 = dma.done [#allocation13], 128
    $region57: #{tpu_custom_call.1} parent=1 // pred_fallthru
      _
    // Predicated region
    $region58: #{tpu_custom_call.1} parent=1 // pred_check
      _
    $region59: #{tpu_custom_call.1} parent=1 // pred_check_branch
      %1133 = sbr.rel (0) target = $region61
    $region60: #{tpu_custom_call.1} parent=1 // pred_region
      %1134 = dma.done [#allocation13], 128
    $region61: #{tpu_custom_call.1} parent=1 // pred_fallthru
      _
    %1135 = vsyncpa [#allocation6], 1
    %1136 = vsyncpa [#allocation9], 1
    %1137 = vsyncpa [#allocation7], 1
    %1138 = vsyncpa [#allocation13], 1

</llo_original>
